<compile_context>
chip_gen: v5e
topology: v5e:2x2
jax: 0.10.0
libtpu: 0.0.40
codegen_flags: <defaults>
</compile_context>

<pallas_src>
import jax
import jax.numpy as jnp
from jax import lax
from jax.experimental import pallas as pl
from jax.experimental.pallas import tpu as pltpu

_HALO = 6    # halo rows/cols required by the largest (13x13) SPP window
_WLEFT = 8   # left W halo: sublane-aligned so the interior + all crops start at col 8


def _round_up(x, m):
    return ((x + m - 1) // m) * m


# ---------------------------------------------------------------------------
# cbl1: fused 1x1 conv (BN scale folded into weights) + bias + SiLU
# ---------------------------------------------------------------------------
def _pw_conv_bias_silu_kernel(x_ref, w_ref, b_ref, o_ref):
    y = jnp.dot(x_ref[...], w_ref[...], preferred_element_type=jnp.float32)
    y = y + b_ref[...]
    o_ref[...] = (y * (1.0 / (1.0 + jnp.exp(-y)))).astype(o_ref.dtype)


def pointwise_conv_bn_silu(x_nhwc, w, scale, bias, tm_max=1024):
    """1x1 conv + folded BN + SiLU.  x_nhwc: (N,H,W,Cin); w: (Cin,Cout)."""
    N, H, W, cin = x_nhwc.shape
    cout = w.shape[1]
    M = N * H * W
    act_dtype = x_nhwc.dtype
    x2d = x_nhwc.reshape(M, cin)
    w_scaled = (w.astype(jnp.float32) * scale.astype(jnp.float32)[None, :]).astype(act_dtype)
    b2d = bias.reshape(1, cout).astype(jnp.float32)

    # Always take a large, sublane-aligned row tile; pad the (cheap) row dim up
    # to a tile multiple instead of shrinking the tile to a divisor of M.
    tm = min(tm_max, _round_up(M, 8))
    Mp = _round_up(M, tm)
    if Mp != M:
        x2d = jnp.pad(x2d, ((0, Mp - M), (0, 0)))

    isz = jnp.dtype(act_dtype).itemsize
    est = 2 * tm * (cin + cout) * isz + cin * cout * isz + 8 * cout * 4
    vmem_limit = int(min(max(2 * est, 32 << 20), 56 << 20))

    out2d = pl.pallas_call(
        _pw_conv_bias_silu_kernel,
        out_shape=jax.ShapeDtypeStruct((Mp, cout), act_dtype),
        grid_spec=pltpu.PrefetchScalarGridSpec(
            num_scalar_prefetch=0,
            grid=(Mp // tm,),
            in_specs=[
                pl.BlockSpec((tm, cin), lambda i: (i, 0)),
                pl.BlockSpec((cin, cout), lambda i: (0, 0)),
                pl.BlockSpec((1, cout), lambda i: (0, 0)),
            ],
            out_specs=pl.BlockSpec((tm, cout), lambda i: (i, 0)),
        ),
        compiler_params=pltpu.CompilerParams(
            dimension_semantics=("parallel",),
            vmem_limit_bytes=vmem_limit,
        ),
    )(x2d, w_scaled, b2d)
    if Mp != M:
        out2d = out2d[:M]
    return out2d.reshape(N, H, W, cout)


# ---------------------------------------------------------------------------
# Fused SPP (cascaded 5x5 pools) + concat + 1x1 conv (BN folded) + SiLU,
# tiled over (image, H-tile) with a 6-row halo.
# ---------------------------------------------------------------------------
def _make_spp_kernel(H, W, C, cout, th, Wp, neg, use_roll):
    P = _HALO
    L = _WLEFT
    R = Wp - L - W
    nrows = th + 2 * P

    def hmax5(t, out_rows):
        # max over 5 consecutive rows (leading axis: cheap slices, no relayout)
        r = t[0:out_rows]
        for s in range(1, 5):
            r = jnp.maximum(r, t[s:s + out_rows])
        return r

    def wmax5_roll(t):
        # SAME 5-max along W keeping full width; shifts run on the XLU via roll.
        # Circular wrap is harmless: the wrapped-in columns are always -inf
        # (left halo 8 / right halo >= 6 erode by only 2 per cascade level).
        r = t
        for s in (1, 2):
            r = jnp.maximum(r, pltpu.roll(t, s, axis=1))
            r = jnp.maximum(r, pltpu.roll(t, -s, axis=1))
        return r

    def wmax5_shrink(t, out_cols):
        # fallback: shifted (possibly sublane-misaligned) slices, shrinking width
        r = t[:, 0:out_cols, :]
        for s in range(1, 5):
            r = jnp.maximum(r, t[:, s:s + out_cols, :])
        return r

    def kernel(img_ref, w2_ref, b2_ref, o_ref, pad_ref, cat_ref):
        h = pl.program_id(1)
        n_h = pl.num_programs(1)
        row0 = h * th
        f32 = jnp.float32

        # ---- halo fills: only the border strips, never the whole scratch ----
        pad_ref[:, 0:L, :] = jnp.full((nrows, L, C), neg, f32)
        pad_ref[:, L + W:, :] = jnp.full((nrows, R, C), neg, f32)

        # interior rows of this H tile
        pad_ref[P:P + th, L:L + W, :] = img_ref[pl.ds(row0, th), :, :].astype(f32)

        # top halo: -inf at the image top edge, neighbor rows otherwise
        @pl.when(h == 0)
        def _():
            pad_ref[0:P, L:L + W, :] = jnp.full((P, W, C), neg, f32)

        @pl.when(h > 0)
        def _():
            pad_ref[0:P, L:L + W, :] = img_ref[pl.ds(row0 - P, P), :, :].astype(f32)

        # bottom halo
        @pl.when(h == n_h - 1)
        def _():
            pad_ref[P + th:, L:L + W, :] = jnp.full((P, W, C), neg, f32)

        @pl.when(h < n_h - 1)
        def _():
            pad_ref[P + th:, L:L + W, :] = img_ref[pl.ds(row0 + th, P), :, :].astype(f32)

        ypad = pad_ref[...]                       # (th+12, Wp, C) f32

        # ---- cascaded 5x5 pools (mp9 = mp5∘mp5, mp13 = mp5∘mp5∘mp5), H first -
        if use_roll:
            e1 = wmax5_roll(hmax5(ypad, th + 8))
            e2 = wmax5_roll(hmax5(e1, th + 4))
            e3 = wmax5_roll(hmax5(e2, th))
            a1 = e1[4:4 + th, L:L + W, :]         # all W crops at offset 8: aligned
            a2 = e2[2:2 + th, L:L + W, :]
            a3 = e3[:, L:L + W, :]
        else:
            e1 = wmax5_shrink(hmax5(ypad, th + 8), Wp - 4)
            e2 = wmax5_shrink(hmax5(e1, th + 4), Wp - 8)
            e3 = wmax5_shrink(hmax5(e2, th), Wp - 12)
            a1 = e1[4:4 + th, L - 2:L - 2 + W, :]
            a2 = e2[2:2 + th, L - 4:L - 4 + W, :]
            a3 = e3[:, L - 6:L - 6 + W, :]
        a0 = ypad[P:P + th, L:L + W, :]

        # ---- fused concat (VMEM only) + single K=4C matmul + bias + SiLU -----
        # NOTE: W is assumed to be a multiple of 8 so the (th,W,C)->(th*W,C)
        # reshapes stay layout friendly (true for typical SPP feature maps).
        cdt = cat_ref.dtype
        cat_ref[:, 0 * C:1 * C] = a0.reshape(th * W, C).astype(cdt)
        cat_ref[:, 1 * C:2 * C] = a1.reshape(th * W, C).astype(cdt)
        cat_ref[:, 2 * C:3 * C] = a2.reshape(th * W, C).astype(cdt)
        cat_ref[:, 3 * C:4 * C] = a3.reshape(th * W, C).astype(cdt)
        z = jnp.dot(cat_ref[...], w2_ref[...], preferred_element_type=jnp.float32)
        z = z + b2_ref[...]
        out = z * (1.0 / (1.0 + jnp.exp(-z)))
        o_ref[...] = out.reshape(th, W, cout).astype(o_ref.dtype)

    return kernel


def spp_concat_conv_bn_silu(y_nhwc, w2, scale2, bias2, tile_rows=32):
    """Fused SPP(5,9,13) + concat + 1x1 conv + BN + SiLU.  y_nhwc: (N,H,W,C)."""
    N, H, W, C = y_nhwc.shape
    cout = w2.shape[1]
    assert w2.shape[0] == 4 * C, (w2.shape, C)
    act_dtype = y_nhwc.dtype
    neg = float(jnp.finfo(jnp.float32).min)       # safe "-inf": every window has a real elem
    w2s = (w2.astype(jnp.float32) * scale2.astype(jnp.float32)[None, :]).astype(act_dtype)
    b2d = bias2.reshape(1, cout).astype(jnp.float32)

    # H-tile size: largest divisor of H that is <= tile_rows and >= 8; whole
    # image otherwise.  The second "parallel" grid axis bounds per-step VMEM and
    # feeds both v7x TensorCores even at N=1.
    th = H
    if H > tile_rows:
        for cand in range(min(tile_rows, H), 7, -1):
            if H % cand == 0:
                th = cand
                break
    n_h = H // th

    L = _WLEFT
    Wp = L + _round_up(W + _HALO, 8)              # left halo 8, right halo >= 6, Wp % 8 == 0

    isz = jnp.dtype(act_dtype).itemsize
    est = (2 * H * W * C * isz                    # whole-image input block (double buffered)
           + 2 * th * W * cout * isz              # output blocks
           + 2 * (4 * C * cout * isz + 4 * cout)  # weights + bias
           + (th + 2 * _HALO) * Wp * C * 4        # padded pooling scratch (f32)
           + th * W * 4 * C * isz                 # concat scratch
           + 4 * (th + 2 * _HALO) * Wp * C * 4    # pooling temporaries
           + 2 * th * W * cout * 4)               # matmul / epilogue temporaries
    vmem_limit = int(min(max(2 * est, 32 << 20), 56 << 20))

    # TODO(synk): for feature maps too large for whole-image VMEM residency,
    # switch the input to memory_space=pl.ANY with manual halo DMA per H tile.
    def build(use_roll):
        return pl.pallas_call(
            _make_spp_kernel(H, W, C, cout, th, Wp, neg, use_roll),
            out_shape=jax.ShapeDtypeStruct((N, H, W, cout), act_dtype),
            grid_spec=pltpu.PrefetchScalarGridSpec(
                num_scalar_prefetch=0,
                grid=(N, n_h),
                in_specs=[
                    pl.BlockSpec((None, H, W, C), lambda n, h: (n, 0, 0, 0)),
                    pl.BlockSpec((4 * C, cout), lambda n, h: (0, 0)),
                    pl.BlockSpec((1, cout), lambda n, h: (0, 0)),
                ],
                out_specs=pl.BlockSpec((None, th, W, cout), lambda n, h: (n, h, 0, 0)),
                scratch_shapes=[
                    pltpu.VMEM((th + 2 * _HALO, Wp, C), jnp.float32),  # padded pooling scratch
                    pltpu.VMEM((th * W, 4 * C), act_dtype),            # aligned concat scratch
                ],
            ),
            compiler_params=pltpu.CompilerParams(
                dimension_semantics=("parallel", "parallel"),
                vmem_limit_bytes=vmem_limit,
            ),
        )

    # Prefer the roll-based (XLU, fully aligned) pooling; fall back to the
    # known-good slice-based form if roll does not lower for this shape.
    try:
        return build(True)(y_nhwc, w2s, b2d)
    except Exception:  # pragma: no cover - lowering fallback
        return build(False)(y_nhwc, w2s, b2d)


# ---------------------------------------------------------------------------
# Module glue
# ---------------------------------------------------------------------------
def fold_bn(gamma, beta, mean, var, eps=1e-5):
    inv = gamma * lax.rsqrt(var + eps)
    return inv, beta - mean * inv


def spp_module_forward(x_nchw, params, *, use_bf16=False, tile_rows=32):
    # TODO(synk): fold the NCHW<->NHWC transposes into the kernels (transposed-LHS
    # matmul on entry, in-VMEM transpose before the store on exit) to save two
    # HBM round trips of the activation tensor.
    out_dtype = x_nchw.dtype
    x = jnp.transpose(x_nchw, (0, 2, 3, 1))
    if use_bf16:
        x = x.astype(jnp.bfloat16)     # bf16 MXU inputs; accumulation/SiLU stay f32
    s1, b1 = fold_bn(*params["bn1"])
    y = pointwise_conv_bn_silu(x, params["w1"], s1, b1)          # cbl1
    s2, b2 = fold_bn(*params["bn2"])
    y = spp_concat_conv_bn_silu(y, params["w2"], s2, b2,
                                tile_rows=tile_rows)             # SPP + cbl2 (fused)
    return jnp.transpose(y, (0, 3, 1, 2)).astype(out_dtype)


# ---------------------------------------------------------------------------
# Pure-JAX reference (for validation only)
# ---------------------------------------------------------------------------
def _ref_forward(x_nchw, params):
    x = jnp.transpose(x_nchw, (0, 2, 3, 1))

    def cbl(x, w, bn):
        s, b = fold_bn(*bn)
        y = jnp.einsum("nhwc,cd->nhwd", x, w) * s + b
        return y * jax.nn.sigmoid(y)

    y = cbl(x, params["w1"], params["bn1"])
    pools = [y] + [
        lax.reduce_window(y, -jnp.inf, lax.max, (1, k, k, 1), (1, 1, 1, 1), "SAME")
        for k in (5, 9, 13)
    ]
    y = jnp.concatenate(pools, axis=-1)
    y = cbl(y, params["w2"], params["bn2"])
    return jnp.transpose(y, (0, 3, 1, 2))


if __name__ == "__main__":
    key = jax.random.PRNGKey(0)
    N, CIN, H, W = 2, 8, 16, 16
    COUT = 8
    HDIM = CIN // 2                        # SPPModule: hdim = cin // 2
    ks = jax.random.split(key, 11)
    x = jax.random.normal(ks[0], (N, CIN, H, W), jnp.float32)
    params = {
        # conv weights stored as (in_ch, out_ch) for the 1x1-conv matmul
        "w1": 0.2 * jax.random.normal(ks[1], (CIN, HDIM), jnp.float32),
        "bn1": (
            1.0 + 0.1 * jax.random.normal(ks[2], (HDIM,), jnp.float32),   # gamma
            0.1 * jax.random.normal(ks[3], (HDIM,), jnp.float32),         # beta
            0.1 * jax.random.normal(ks[4], (HDIM,), jnp.float32),         # running_mean
            0.5 + jax.random.uniform(ks[5], (HDIM,), jnp.float32),        # running_var
        ),
        "w2": 0.2 * jax.random.normal(ks[6], (4 * HDIM, COUT), jnp.float32),
        "bn2": (
            1.0 + 0.1 * jax.random.normal(ks[7], (COUT,), jnp.float32),
            0.1 * jax.random.normal(ks[8], (COUT,), jnp.float32),
            0.1 * jax.random.normal(ks[9], (COUT,), jnp.float32),
            0.5 + jax.random.uniform(ks[10], (COUT,), jnp.float32),
        ),
    }

    ref = jax.block_until_ready(_ref_forward(x, params))

    # Default path (single H tile per image at this size).
    out = jax.block_until_ready(spp_module_forward(x, params))
    assert out.shape == (N, COUT, H, W), out.shape
    assert jnp.allclose(out, ref, atol=1e-4, rtol=1e-4), float(jnp.max(jnp.abs(out - ref)))

    # Explicitly H-tiled path (2 tiles of 8 rows: exercises the halo exchange).
    out_t = jax.block_until_ready(spp_module_forward(x, params, tile_rows=8))
    assert jnp.allclose(out_t, ref, atol=1e-4, rtol=1e-4), float(jnp.max(jnp.abs(out_t - ref)))

    # bf16 matmul-input path (f32 accumulation); loose tolerance by design.
    out_bf = jax.block_until_ready(spp_module_forward(x, params, use_bf16=True))
    assert float(jnp.max(jnp.abs(out_bf - ref))) < 0.25

    print("KERNEL_OK")
</pallas_src>

<mosaic_0001>
module attributes {stable_mosaic.version = 11 : i64} {
  func.func @_pw_conv_bias_silu_kernel(%arg0: i32, %arg1: memref<512x8xf32, #tpu.memory_space<vmem>>, %arg2: memref<8x4xf32, #tpu.memory_space<vmem>>, %arg3: memref<1x4xf32, #tpu.memory_space<vmem>>, %arg4: memref<512x4xf32, #tpu.memory_space<vmem>>) attributes {dimension_semantics = [#tpu.dimension_semantics<parallel>], iteration_bounds = array<i64: 1>, scalar_prefetch = 0 : i64, scratch_operands = 0 : i64, tpu.core_type = #tpu.core_type<tc>, window_params = [{transform_indices = @transform_0, window_bounds = array<i64: 512, 8>}, {pipeline_mode = #tpu.pipeline_mode<synchronous>, transform_indices = @transform_1, window_bounds = array<i64: 8, 4>}, {pipeline_mode = #tpu.pipeline_mode<synchronous>, transform_indices = @transform_2, window_bounds = array<i64: 1, 4>}, {transform_indices = @transform_3, window_bounds = array<i64: 512, 4>}]} {
    %c0 = arith.constant 0 : index
    %c0_0 = arith.constant 0 : index
    %0 = vector.load %arg1[%c0, %c0_0] : memref<512x8xf32, #tpu.memory_space<vmem>>, vector<512x8xf32>
    %c0_1 = arith.constant 0 : index
    %c0_2 = arith.constant 0 : index
    %1 = vector.load %arg2[%c0_1, %c0_2] : memref<8x4xf32, #tpu.memory_space<vmem>>, vector<8x4xf32>
    %cst = arith.constant dense<0.000000e+00> : vector<512x4xf32>
    %2 = tpu.matmul %0, %1, %cst {dimension_numbers = #tpu.dot_dimension_numbers<[1], [0], [0], [1], [0, 0, 1, 1], [], []>} : vector<512x8xf32>, vector<8x4xf32>, vector<512x4xf32> -> vector<512x4xf32>
    %c0_3 = arith.constant 0 : index
    %c0_4 = arith.constant 0 : index
    %3 = vector.load %arg3[%c0_3, %c0_4] : memref<1x4xf32, #tpu.memory_space<vmem>>, vector<1x4xf32>
    %4 = vector.broadcast %3 : vector<1x4xf32> to vector<512x4xf32>
    %5 = arith.addf %2, %4 : vector<512x4xf32>
    %cst_5 = arith.constant 0.000000e+00 : f32
    %6 = vector.broadcast %cst_5 : f32 to vector<512x4xf32>
    %7 = arith.subf %6, %5 : vector<512x4xf32>
    %8 = math.exp %7 : vector<512x4xf32>
    %cst_6 = arith.constant 1.000000e+00 : f32
    %9 = vector.broadcast %cst_6 : f32 to vector<512x4xf32>
    %10 = arith.addf %9, %8 : vector<512x4xf32>
    %cst_7 = arith.constant 1.000000e+00 : f32
    %11 = vector.broadcast %cst_7 : f32 to vector<512x4xf32>
    %12 = arith.divf %11, %10 : vector<512x4xf32>
    %13 = arith.mulf %5, %12 : vector<512x4xf32>
    %c0_8 = arith.constant 0 : index
    %c0_9 = arith.constant 0 : index
    %14 = vector.load %arg4[%c0_8, %c0_9] : memref<512x4xf32, #tpu.memory_space<vmem>>, vector<512x4xf32>
    tpu.vector_store %arg4[%c0_8, %c0_9], %13 {strides = array<i32>} : memref<512x4xf32, #tpu.memory_space<vmem>>, vector<512x4xf32>,
    return
  }
  func.func @transform_0(%arg0: i32) -> (i32, i32) {
    %c0_i32 = arith.constant 0 : i32
    %c0_i32_0 = arith.constant 0 : i32
    return %arg0, %c0_i32 : i32, i32
  }
  func.func @transform_1(%arg0: i32) -> (i32, i32) {
    %c0_i32 = arith.constant 0 : i32
    %c0_i32_0 = arith.constant 0 : i32
    %c0_i32_1 = arith.constant 0 : i32
    return %c0_i32, %c0_i32_0 : i32, i32
  }
  func.func @transform_2(%arg0: i32) -> (i32, i32) {
    %c0_i32 = arith.constant 0 : i32
    %c0_i32_0 = arith.constant 0 : i32
    %c0_i32_1 = arith.constant 0 : i32
    return %c0_i32, %c0_i32_0 : i32, i32
  }
  func.func @transform_3(%arg0: i32) -> (i32, i32) {
    %c0_i32 = arith.constant 0 : i32
    %c0_i32_0 = arith.constant 0 : i32
    return %arg0, %c0_i32 : i32, i32
  }
}

</mosaic_0001>

<llo_original>
// kernel: tpu_custom_call.1
$region0: #{tpu_custom_call.1}
  #allocation0 [shape = 'u32[]', space=smem, size = 0x4, offset = 0x4, fixed_abs, tag = 'smem constant byte address 0x4 - core index']
  #allocation1 [shape = 'u32[72,128]{1,0:T(1,128)}', space=vmem, size = 0x9000, scoped, tag = 'internal scratch']
  %s0 = inlined_call_operand.vmem [shape: f32[512,8], index: 0, kind: input, shape index: {}]
  %s1 = inlined_call_operand.vmem [shape: f32[8,4], index: 1, kind: input, shape index: {}]
  %s2 = inlined_call_operand.vmem [shape: f32[1,4], index: 2, kind: input, shape index: {}]
  %s3 = inlined_call_operand.vmem [shape: f32[512,4], index: 3, kind: output, shape index: {}]
  %s4 = sld [smem:[#allocation0]]
  $region22: #{tpu_custom_call.1} parent=0
    _
  %s6 = ssub.s32 1, %s4
  %s7 = scalar_select 0, %s6, %s4
  // Predicated region
  $region2: #{tpu_custom_call.1} parent=0 // pred_check
    _
  $region3: #{tpu_custom_call.1} parent=0 // pred_check_branch
    %9 = sbr.rel (0) target = $region5
  $region4: #{tpu_custom_call.1} parent=0 // pred_region
    _
  $region5: #{tpu_custom_call.1} parent=0 // pred_fallthru
    _
  // Predicated region
  $region6: #{tpu_custom_call.1} parent=0 // pred_check
    _
  $region7: #{tpu_custom_call.1} parent=0 // pred_check_branch
    %11 = sbr.rel (0) target = $region9
  $region8: #{tpu_custom_call.1} parent=0 // pred_region
    _
  $region9: #{tpu_custom_call.1} parent=0 // pred_fallthru
    _
  // Predicated region
  $region10: #{tpu_custom_call.1} parent=0 // pred_check
    _
  $region11: #{tpu_custom_call.1} parent=0 // pred_check_branch
    %13 = sbr.rel (0) target = $region13
  $region12: #{tpu_custom_call.1} parent=0 // pred_region
    _
  $region13: #{tpu_custom_call.1} parent=0 // pred_fallthru
    _
  %v14 = vld [vmem:[%s0] sm:$0xff]
  %v15 = vld [vmem:[%s0 + $0x8] sm:$0xff]
  %v16 = vld [vmem:[%s0 + $0x10] sm:$0xff]
  %v17 = vld [vmem:[%s0 + $0x18] sm:$0xff]
  %v18 = vld [vmem:[%s0 + $0x20] sm:$0xff]
  %v19 = vld [vmem:[%s0 + $0x28] sm:$0xff]
  %v20 = vld [vmem:[%s0 + $0x30] sm:$0xff]
  %v21 = vld [vmem:[%s0 + $0x38] sm:$0xff]
  %v22 = vld [vmem:[%s0 + $0x40] sm:$0xff]
  %v23 = vld [vmem:[%s0 + $0x48] sm:$0xff]
  %v24 = vld [vmem:[%s0 + $0x50] sm:$0xff]
  %v25 = vld [vmem:[%s0 + $0x58] sm:$0xff]
  %v26 = vld [vmem:[%s0 + $0x60] sm:$0xff]
  %v27 = vld [vmem:[%s0 + $0x68] sm:$0xff]
  %v28 = vld [vmem:[%s0 + $0x70] sm:$0xff]
  %v29 = vld [vmem:[%s0 + $0x78] sm:$0xff]
  %v30 = vld [vmem:[%s0 + $0x80] sm:$0xff]
  %v31 = vld [vmem:[%s0 + $0x88] sm:$0xff]
  %v32 = vld [vmem:[%s0 + $0x90] sm:$0xff]
  %v33 = vld [vmem:[%s0 + $0x98] sm:$0xff]
  %v34 = vld [vmem:[%s0 + $0xa0] sm:$0xff]
  %v35 = vld [vmem:[%s0 + $0xa8] sm:$0xff]
  %v36 = vld [vmem:[%s0 + $0xb0] sm:$0xff]
  %v37 = vld [vmem:[%s0 + $0xb8] sm:$0xff]
  %v38 = vld [vmem:[%s0 + $0xc0] sm:$0xff]
  %v39 = vld [vmem:[%s0 + $0xc8] sm:$0xff]
  %v40 = vld [vmem:[%s0 + $0xd0] sm:$0xff]
  %v41 = vld [vmem:[%s0 + $0xd8] sm:$0xff]
  %v42 = vld [vmem:[%s0 + $0xe0] sm:$0xff]
  %v43 = vld [vmem:[%s0 + $0xe8] sm:$0xff]
  %v44 = vld [vmem:[%s0 + $0xf0] sm:$0xff]
  %v45 = vld [vmem:[%s0 + $0xf8] sm:$0xff]
  %v46 = vld [vmem:[%s0 + $0x100] sm:$0xff]
  %v47 = vld [vmem:[%s0 + $0x108] sm:$0xff]
  %v48 = vld [vmem:[%s0 + $0x110] sm:$0xff]
  %v49 = vld [vmem:[%s0 + $0x118] sm:$0xff]
  %v50 = vld [vmem:[%s0 + $0x120] sm:$0xff]
  %v51 = vld [vmem:[%s0 + $0x128] sm:$0xff]
  %v52 = vld [vmem:[%s0 + $0x130] sm:$0xff]
  %v53 = vld [vmem:[%s0 + $0x138] sm:$0xff]
  %v54 = vld [vmem:[%s0 + $0x140] sm:$0xff]
  %v55 = vld [vmem:[%s0 + $0x148] sm:$0xff]
  %v56 = vld [vmem:[%s0 + $0x150] sm:$0xff]
  %v57 = vld [vmem:[%s0 + $0x158] sm:$0xff]
  %v58 = vld [vmem:[%s0 + $0x160] sm:$0xff]
  %v59 = vld [vmem:[%s0 + $0x168] sm:$0xff]
  %v60 = vld [vmem:[%s0 + $0x170] sm:$0xff]
  %v61 = vld [vmem:[%s0 + $0x178] sm:$0xff]
  %v62 = vld [vmem:[%s0 + $0x180] sm:$0xff]
  %v63 = vld [vmem:[%s0 + $0x188] sm:$0xff]
  %v64 = vld [vmem:[%s0 + $0x190] sm:$0xff]
  %v65 = vld [vmem:[%s0 + $0x198] sm:$0xff]
  %v66 = vld [vmem:[%s0 + $0x1a0] sm:$0xff]
  %v67 = vld [vmem:[%s0 + $0x1a8] sm:$0xff]
  %v68 = vld [vmem:[%s0 + $0x1b0] sm:$0xff]
  %v69 = vld [vmem:[%s0 + $0x1b8] sm:$0xff]
  %v70 = vld [vmem:[%s0 + $0x1c0] sm:$0xff]
  %v71 = vld [vmem:[%s0 + $0x1c8] sm:$0xff]
  %v72 = vld [vmem:[%s0 + $0x1d0] sm:$0xff]
  %v73 = vld [vmem:[%s0 + $0x1d8] sm:$0xff]
  %v74 = vld [vmem:[%s0 + $0x1e0] sm:$0xff]
  %v75 = vld [vmem:[%s0 + $0x1e8] sm:$0xff]
  %v76 = vld [vmem:[%s0 + $0x1f0] sm:$0xff]
  %v77 = vld [vmem:[%s0 + $0x1f8] sm:$0xff]
  %v78 = vld [vmem:[%s1] sm:$0xff]
  %v79 = vld [vmem:[%s2] sm:$0x1]
  %v81 = vperm.slane %v79, 0
  %vm83 = vcmask 64512
  %v85 = vsel %vm83, %v14, 0
  %v88 = vsel %vm83, %v15, 0
  %v91 = vsel %vm83, %v16, 0
  %v94 = vsel %vm83, %v17, 0
  %v97 = vsel %vm83, %v18, 0
  %v100 = vsel %vm83, %v19, 0
  %v103 = vsel %vm83, %v20, 0
  %v106 = vsel %vm83, %v21, 0
  %v109 = vsel %vm83, %v22, 0
  %v112 = vsel %vm83, %v23, 0
  %v115 = vsel %vm83, %v24, 0
  %v118 = vsel %vm83, %v25, 0
  %v121 = vsel %vm83, %v26, 0
  %v124 = vsel %vm83, %v27, 0
  %v127 = vsel %vm83, %v28, 0
  %v130 = vsel %vm83, %v29, 0
  %v133 = vsel %vm83, %v30, 0
  %v136 = vsel %vm83, %v31, 0
  %v139 = vsel %vm83, %v32, 0
  %v142 = vsel %vm83, %v33, 0
  %v145 = vsel %vm83, %v34, 0
  %v148 = vsel %vm83, %v35, 0
  %v151 = vsel %vm83, %v36, 0
  %v154 = vsel %vm83, %v37, 0
  %v157 = vsel %vm83, %v38, 0
  %v160 = vsel %vm83, %v39, 0
  %v163 = vsel %vm83, %v40, 0
  %v166 = vsel %vm83, %v41, 0
  %v169 = vsel %vm83, %v42, 0
  %v172 = vsel %vm83, %v43, 0
  %v175 = vsel %vm83, %v44, 0
  %v178 = vsel %vm83, %v45, 0
  %v181 = vsel %vm83, %v46, 0
  %v184 = vsel %vm83, %v47, 0
  %v187 = vsel %vm83, %v48, 0
  %v190 = vsel %vm83, %v49, 0
  %v193 = vsel %vm83, %v50, 0
  %v196 = vsel %vm83, %v51, 0
  %v199 = vsel %vm83, %v52, 0
  %v202 = vsel %vm83, %v53, 0
  %v205 = vsel %vm83, %v54, 0
  %v208 = vsel %vm83, %v55, 0
  %v211 = vsel %vm83, %v56, 0
  %v214 = vsel %vm83, %v57, 0
  %v217 = vsel %vm83, %v58, 0
  %v220 = vsel %vm83, %v59, 0
  %v223 = vsel %vm83, %v60, 0
  %v226 = vsel %vm83, %v61, 0
  %v229 = vsel %vm83, %v62, 0
  %v232 = vsel %vm83, %v63, 0
  %v235 = vsel %vm83, %v64, 0
  %v238 = vsel %vm83, %v65, 0
  %v241 = vsel %vm83, %v66, 0
  %v244 = vsel %vm83, %v67, 0
  %v247 = vsel %vm83, %v68, 0
  %v250 = vsel %vm83, %v69, 0
  %v253 = vsel %vm83, %v70, 0
  %v256 = vsel %vm83, %v71, 0
  %v259 = vsel %vm83, %v72, 0
  %v262 = vsel %vm83, %v73, 0
  %v265 = vsel %vm83, %v74, 0
  %v268 = vsel %vm83, %v75, 0
  %v271 = vsel %vm83, %v76, 0
  %v274 = vsel %vm83, %v77, 0
  %276 = vmatpush.msra.mxu0 0.0
  %277 = vmatpush.msra.mxu0 0.0
  %278 = vmatpush.msra.mxu0 0.0
  %279 = vmatpush.msra.mxu0 0.0
  %280 = vmatpush.msra.mxu0 0.0
  %281 = vmatpush.msra.mxu0 0.0
  %282 = vmatpush.msra.mxu0 0.0
  %283 = vmatpush.msra.mxu0 0.0
  %284 = vmatpush.msra.mxu0 0.0
  %285 = vmatpush.msra.mxu0 0.0
  %286 = vmatpush.msra.mxu0 0.0
  %287 = vmatpush.msra.mxu0 0.0
  %288 = vmatpush.msra.mxu0 0.0
  %289 = vmatpush.msra.mxu0 0.0
  %290 = vmatpush.msra.mxu0 0.0
  %291 = vmatpush.msra.mxu0 %v78
  %292 = vmatmul.f32.gmra.mxu0 %v85
  %v293 = vpop.f32.mrf.mxu0
  %v294 = vadd.f32 %v81, %v293
  %295 = vmatmul.f32.gmra.mxu0 %v88
  %v296 = vpop.f32.mrf.mxu0
  %v297 = vadd.f32 %v81, %v296
  %298 = vmatmul.f32.gmra.mxu0 %v91
  %v299 = vpop.f32.mrf.mxu0
  %v300 = vadd.f32 %v81, %v299
  %301 = vmatmul.f32.gmra.mxu0 %v94
  %v302 = vpop.f32.mrf.mxu0
  %v303 = vadd.f32 %v81, %v302
  %304 = vmatmul.f32.gmra.mxu0 %v97
  %v305 = vpop.f32.mrf.mxu0
  %v306 = vadd.f32 %v81, %v305
  %307 = vmatmul.f32.gmra.mxu0 %v100
  %v308 = vpop.f32.mrf.mxu0
  %v309 = vadd.f32 %v81, %v308
  %310 = vmatmul.f32.gmra.mxu0 %v103
  %v311 = vpop.f32.mrf.mxu0
  %v312 = vadd.f32 %v81, %v311
  %313 = vmatmul.f32.gmra.mxu0 %v106
  %v314 = vpop.f32.mrf.mxu0
  %v315 = vadd.f32 %v81, %v314
  %316 = vmatmul.f32.gmra.mxu0 %v109
  %v317 = vpop.f32.mrf.mxu0
  %v318 = vadd.f32 %v81, %v317
  %319 = vmatmul.f32.gmra.mxu0 %v112
  %v320 = vpop.f32.mrf.mxu0
  %v321 = vadd.f32 %v81, %v320
  %322 = vmatmul.f32.gmra.mxu0 %v115
  %v323 = vpop.f32.mrf.mxu0
  %v324 = vadd.f32 %v81, %v323
  %325 = vmatmul.f32.gmra.mxu0 %v118
  %v326 = vpop.f32.mrf.mxu0
  %v327 = vadd.f32 %v81, %v326
  %328 = vmatmul.f32.gmra.mxu0 %v121
  %v329 = vpop.f32.mrf.mxu0
  %v330 = vadd.f32 %v81, %v329
  %331 = vmatmul.f32.gmra.mxu0 %v124
  %v332 = vpop.f32.mrf.mxu0
  %v333 = vadd.f32 %v81, %v332
  %334 = vmatmul.f32.gmra.mxu0 %v127
  %v335 = vpop.f32.mrf.mxu0
  %v336 = vadd.f32 %v81, %v335
  %337 = vmatmul.f32.gmra.mxu0 %v130
  %v338 = vpop.f32.mrf.mxu0
  %v339 = vadd.f32 %v81, %v338
  %340 = vmatmul.f32.gmra.mxu0 %v133
  %v341 = vpop.f32.mrf.mxu0
  %v342 = vadd.f32 %v81, %v341
  %343 = vmatmul.f32.gmra.mxu0 %v136
  %v344 = vpop.f32.mrf.mxu0
  %v345 = vadd.f32 %v81, %v344
  %346 = vmatmul.f32.gmra.mxu0 %v139
  %v347 = vpop.f32.mrf.mxu0
  %v348 = vadd.f32 %v81, %v347
  %349 = vmatmul.f32.gmra.mxu0 %v142
  %v350 = vpop.f32.mrf.mxu0
  %v351 = vadd.f32 %v81, %v350
  %352 = vmatmul.f32.gmra.mxu0 %v145
  %v353 = vpop.f32.mrf.mxu0
  %v354 = vadd.f32 %v81, %v353
  %355 = vmatmul.f32.gmra.mxu0 %v148
  %v356 = vpop.f32.mrf.mxu0
  %v357 = vadd.f32 %v81, %v356
  %358 = vmatmul.f32.gmra.mxu0 %v151
  %v359 = vpop.f32.mrf.mxu0
  %v360 = vadd.f32 %v81, %v359
  %361 = vmatmul.f32.gmra.mxu0 %v154
  %v362 = vpop.f32.mrf.mxu0
  %v363 = vadd.f32 %v81, %v362
  %364 = vmatmul.f32.gmra.mxu0 %v157
  %v365 = vpop.f32.mrf.mxu0
  %v366 = vadd.f32 %v81, %v365
  %367 = vmatmul.f32.gmra.mxu0 %v160
  %v368 = vpop.f32.mrf.mxu0
  %v369 = vadd.f32 %v81, %v368
  %370 = vmatmul.f32.gmra.mxu0 %v163
  %v371 = vpop.f32.mrf.mxu0
  %v372 = vadd.f32 %v81, %v371
  %373 = vmatmul.f32.gmra.mxu0 %v166
  %v374 = vpop.f32.mrf.mxu0
  %v375 = vadd.f32 %v81, %v374
  %376 = vmatmul.f32.gmra.mxu0 %v169
  %v377 = vpop.f32.mrf.mxu0
  %v378 = vadd.f32 %v81, %v377
  %379 = vmatmul.f32.gmra.mxu0 %v172
  %v380 = vpop.f32.mrf.mxu0
  %v381 = vadd.f32 %v81, %v380
  %382 = vmatmul.f32.gmra.mxu0 %v175
  %v383 = vpop.f32.mrf.mxu0
  %v384 = vadd.f32 %v81, %v383
  %385 = vmatmul.f32.gmra.mxu0 %v178
  %v386 = vpop.f32.mrf.mxu0
  %v387 = vadd.f32 %v81, %v386
  %388 = vmatmul.f32.gmra.mxu0 %v181
  %v389 = vpop.f32.mrf.mxu0
  %v390 = vadd.f32 %v81, %v389
  %391 = vmatmul.f32.gmra.mxu0 %v184
  %v392 = vpop.f32.mrf.mxu0
  %v393 = vadd.f32 %v81, %v392
  %394 = vmatmul.f32.gmra.mxu0 %v187
  %v395 = vpop.f32.mrf.mxu0
  %v396 = vadd.f32 %v81, %v395
  %397 = vmatmul.f32.gmra.mxu0 %v190
  %v398 = vpop.f32.mrf.mxu0
  %v399 = vadd.f32 %v81, %v398
  %400 = vmatmul.f32.gmra.mxu0 %v193
  %v401 = vpop.f32.mrf.mxu0
  %v402 = vadd.f32 %v81, %v401
  %403 = vmatmul.f32.gmra.mxu0 %v196
  %v404 = vpop.f32.mrf.mxu0
  %v405 = vadd.f32 %v81, %v404
  %406 = vmatmul.f32.gmra.mxu0 %v199
  %v407 = vpop.f32.mrf.mxu0
  %v408 = vadd.f32 %v81, %v407
  %409 = vmatmul.f32.gmra.mxu0 %v202
  %v410 = vpop.f32.mrf.mxu0
  %v411 = vadd.f32 %v81, %v410
  %412 = vmatmul.f32.gmra.mxu0 %v205
  %v413 = vpop.f32.mrf.mxu0
  %v414 = vadd.f32 %v81, %v413
  %415 = vmatmul.f32.gmra.mxu0 %v208
  %v416 = vpop.f32.mrf.mxu0
  %v417 = vadd.f32 %v81, %v416
  %418 = vmatmul.f32.gmra.mxu0 %v211
  %v419 = vpop.f32.mrf.mxu0
  %v420 = vadd.f32 %v81, %v419
  %421 = vmatmul.f32.gmra.mxu0 %v214
  %v422 = vpop.f32.mrf.mxu0
  %v423 = vadd.f32 %v81, %v422
  %424 = vmatmul.f32.gmra.mxu0 %v217
  %v425 = vpop.f32.mrf.mxu0
  %v426 = vadd.f32 %v81, %v425
  %427 = vmatmul.f32.gmra.mxu0 %v220
  %v428 = vpop.f32.mrf.mxu0
  %v429 = vadd.f32 %v81, %v428
  %430 = vmatmul.f32.gmra.mxu0 %v223
  %v431 = vpop.f32.mrf.mxu0
  %v432 = vadd.f32 %v81, %v431
  %433 = vmatmul.f32.gmra.mxu0 %v226
  %v434 = vpop.f32.mrf.mxu0
  %v435 = vadd.f32 %v81, %v434
  %436 = vmatmul.f32.gmra.mxu0 %v229
  %v437 = vpop.f32.mrf.mxu0
  %v438 = vadd.f32 %v81, %v437
  %439 = vmatmul.f32.gmra.mxu0 %v232
  %v440 = vpop.f32.mrf.mxu0
  %v441 = vadd.f32 %v81, %v440
  %442 = vmatmul.f32.gmra.mxu0 %v235
  %v443 = vpop.f32.mrf.mxu0
  %v444 = vadd.f32 %v81, %v443
  %445 = vmatmul.f32.gmra.mxu0 %v238
  %v446 = vpop.f32.mrf.mxu0
  %v447 = vadd.f32 %v81, %v446
  %448 = vmatmul.f32.gmra.mxu0 %v241
  %v449 = vpop.f32.mrf.mxu0
  %v450 = vadd.f32 %v81, %v449
  %451 = vmatmul.f32.gmra.mxu0 %v244
  %v452 = vpop.f32.mrf.mxu0
  %v453 = vadd.f32 %v81, %v452
  %454 = vmatmul.f32.gmra.mxu0 %v247
  %v455 = vpop.f32.mrf.mxu0
  %v456 = vadd.f32 %v81, %v455
  %457 = vmatmul.f32.gmra.mxu0 %v250
  %v458 = vpop.f32.mrf.mxu0
  %v459 = vadd.f32 %v81, %v458
  %460 = vmatmul.f32.gmra.mxu0 %v253
  %v461 = vpop.f32.mrf.mxu0
  %v462 = vadd.f32 %v81, %v461
  %463 = vmatmul.f32.gmra.mxu0 %v256
  %v464 = vpop.f32.mrf.mxu0
  %v465 = vadd.f32 %v81, %v464
  %466 = vmatmul.f32.gmra.mxu0 %v259
  %v467 = vpop.f32.mrf.mxu0
  %v468 = vadd.f32 %v81, %v467
  %469 = vmatmul.f32.gmra.mxu0 %v262
  %v470 = vpop.f32.mrf.mxu0
  %v471 = vadd.f32 %v81, %v470
  %472 = vmatmul.f32.gmra.mxu0 %v265
  %v473 = vpop.f32.mrf.mxu0
  %v474 = vadd.f32 %v81, %v473
  %475 = vmatmul.f32.gmra.mxu0 %v268
  %v476 = vpop.f32.mrf.mxu0
  %v477 = vadd.f32 %v81, %v476
  %478 = vmatmul.f32.gmra.mxu0 %v271
  %v479 = vpop.f32.mrf.mxu0
  %v480 = vadd.f32 %v81, %v479
  %481 = vmatmul.f32.gmra.mxu0 %v274
  %v482 = vpop.f32.mrf.mxu0
  %v483 = vadd.f32 %v81, %v482
  %484 = vdwg.mxu0
  %v485 = vsub.f32 0.0, %v294
  %v486 = vsub.f32 0.0, %v297
  %v487 = vsub.f32 0.0, %v300
  %v488 = vsub.f32 0.0, %v303
  %v489 = vsub.f32 0.0, %v306
  %v490 = vsub.f32 0.0, %v309
  %v491 = vsub.f32 0.0, %v312
  %v492 = vsub.f32 0.0, %v315
  %v493 = vsub.f32 0.0, %v318
  %v494 = vsub.f32 0.0, %v321
  %v495 = vsub.f32 0.0, %v324
  %v496 = vsub.f32 0.0, %v327
  %v497 = vsub.f32 0.0, %v330
  %v498 = vsub.f32 0.0, %v333
  %v499 = vsub.f32 0.0, %v336
  %v500 = vsub.f32 0.0, %v339
  %v501 = vsub.f32 0.0, %v342
  %v502 = vsub.f32 0.0, %v345
  %v503 = vsub.f32 0.0, %v348
  %v504 = vsub.f32 0.0, %v351
  %v505 = vsub.f32 0.0, %v354
  %v506 = vsub.f32 0.0, %v357
  %v507 = vsub.f32 0.0, %v360
  %v508 = vsub.f32 0.0, %v363
  %v509 = vsub.f32 0.0, %v366
  %v510 = vsub.f32 0.0, %v369
  %v511 = vsub.f32 0.0, %v372
  %v512 = vsub.f32 0.0, %v375
  %v513 = vsub.f32 0.0, %v378
  %v514 = vsub.f32 0.0, %v381
  %v515 = vsub.f32 0.0, %v384
  %v516 = vsub.f32 0.0, %v387
  %v517 = vsub.f32 0.0, %v390
  %v518 = vsub.f32 0.0, %v393
  %v519 = vsub.f32 0.0, %v396
  %v520 = vsub.f32 0.0, %v399
  %v521 = vsub.f32 0.0, %v402
  %v522 = vsub.f32 0.0, %v405
  %v523 = vsub.f32 0.0, %v408
  %v524 = vsub.f32 0.0, %v411
  %v525 = vsub.f32 0.0, %v414
  %v526 = vsub.f32 0.0, %v417
  %v527 = vsub.f32 0.0, %v420
  %v528 = vsub.f32 0.0, %v423
  %v529 = vsub.f32 0.0, %v426
  %v530 = vsub.f32 0.0, %v429
  %v531 = vsub.f32 0.0, %v432
  %v532 = vsub.f32 0.0, %v435
  %v533 = vsub.f32 0.0, %v438
  %v534 = vsub.f32 0.0, %v441
  %v535 = vsub.f32 0.0, %v444
  %v536 = vsub.f32 0.0, %v447
  %v537 = vsub.f32 0.0, %v450
  %v538 = vsub.f32 0.0, %v453
  %v539 = vsub.f32 0.0, %v456
  %v540 = vsub.f32 0.0, %v459
  %v541 = vsub.f32 0.0, %v462
  %v542 = vsub.f32 0.0, %v465
  %v543 = vsub.f32 0.0, %v468
  %v544 = vsub.f32 0.0, %v471
  %v545 = vsub.f32 0.0, %v474
  %v546 = vsub.f32 0.0, %v477
  %v547 = vsub.f32 0.0, %v480
  %v548 = vsub.f32 0.0, %v483
  %v549 = vmul.f32 %v485, 1.442695
  %v550 = vpow.pop %v549
  %v551 = vmul.f32 %v486, 1.442695
  %v552 = vpow.pop %v551
  %v553 = vmul.f32 %v487, 1.442695
  %v554 = vpow.pop %v553
  %v555 = vmul.f32 %v488, 1.442695
  %v556 = vpow.pop %v555
  %v557 = vmul.f32 %v489, 1.442695
  %v558 = vpow.pop %v557
  %v559 = vmul.f32 %v490, 1.442695
  %v560 = vpow.pop %v559
  %v561 = vmul.f32 %v491, 1.442695
  %v562 = vpow.pop %v561
  %v563 = vmul.f32 %v492, 1.442695
  %v564 = vpow.pop %v563
  %v565 = vmul.f32 %v493, 1.442695
  %v566 = vpow.pop %v565
  %v567 = vmul.f32 %v494, 1.442695
  %v568 = vpow.pop %v567
  %v569 = vmul.f32 %v495, 1.442695
  %v570 = vpow.pop %v569
  %v571 = vmul.f32 %v496, 1.442695
  %v572 = vpow.pop %v571
  %v573 = vmul.f32 %v497, 1.442695
  %v574 = vpow.pop %v573
  %v575 = vmul.f32 %v498, 1.442695
  %v576 = vpow.pop %v575
  %v577 = vmul.f32 %v499, 1.442695
  %v578 = vpow.pop %v577
  %v579 = vmul.f32 %v500, 1.442695
  %v580 = vpow.pop %v579
  %v581 = vmul.f32 %v501, 1.442695
  %v582 = vpow.pop %v581
  %v583 = vmul.f32 %v502, 1.442695
  %v584 = vpow.pop %v583
  %v585 = vmul.f32 %v503, 1.442695
  %v586 = vpow.pop %v585
  %v587 = vmul.f32 %v504, 1.442695
  %v588 = vpow.pop %v587
  %v589 = vmul.f32 %v505, 1.442695
  %v590 = vpow.pop %v589
  %v591 = vmul.f32 %v506, 1.442695
  %v592 = vpow.pop %v591
  %v593 = vmul.f32 %v507, 1.442695
  %v594 = vpow.pop %v593
  %v595 = vmul.f32 %v508, 1.442695
  %v596 = vpow.pop %v595
  %v597 = vmul.f32 %v509, 1.442695
  %v598 = vpow.pop %v597
  %v599 = vmul.f32 %v510, 1.442695
  %v600 = vpow.pop %v599
  %v601 = vmul.f32 %v511, 1.442695
  %v602 = vpow.pop %v601
  %v603 = vmul.f32 %v512, 1.442695
  %v604 = vpow.pop %v603
  %v605 = vmul.f32 %v513, 1.442695
  %v606 = vpow.pop %v605
  %v607 = vmul.f32 %v514, 1.442695
  %v608 = vpow.pop %v607
  %v609 = vmul.f32 %v515, 1.442695
  %v610 = vpow.pop %v609
  %v611 = vmul.f32 %v516, 1.442695
  %v612 = vpow.pop %v611
  %v613 = vmul.f32 %v517, 1.442695
  %v614 = vpow.pop %v613
  %v615 = vmul.f32 %v518, 1.442695
  %v616 = vpow.pop %v615
  %v617 = vmul.f32 %v519, 1.442695
  %v618 = vpow.pop %v617
  %v619 = vmul.f32 %v520, 1.442695
  %v620 = vpow.pop %v619
  %v621 = vmul.f32 %v521, 1.442695
  %v622 = vpow.pop %v621
  %v623 = vmul.f32 %v522, 1.442695
  %v624 = vpow.pop %v623
  %v625 = vmul.f32 %v523, 1.442695
  %v626 = vpow.pop %v625
  %v627 = vmul.f32 %v524, 1.442695
  %v628 = vpow.pop %v627
  %v629 = vmul.f32 %v525, 1.442695
  %v630 = vpow.pop %v629
  %v631 = vmul.f32 %v526, 1.442695
  %v632 = vpow.pop %v631
  %v633 = vmul.f32 %v527, 1.442695
  %v634 = vpow.pop %v633
  %v635 = vmul.f32 %v528, 1.442695
  %v636 = vpow.pop %v635
  %v637 = vmul.f32 %v529, 1.442695
  %v638 = vpow.pop %v637
  %v639 = vmul.f32 %v530, 1.442695
  %v640 = vpow.pop %v639
  %v641 = vmul.f32 %v531, 1.442695
  %v642 = vpow.pop %v641
  %v643 = vmul.f32 %v532, 1.442695
  %v644 = vpow.pop %v643
  %v645 = vmul.f32 %v533, 1.442695
  %v646 = vpow.pop %v645
  %v647 = vmul.f32 %v534, 1.442695
  %v648 = vpow.pop %v647
  %v649 = vmul.f32 %v535, 1.442695
  %v650 = vpow.pop %v649
  %v651 = vmul.f32 %v536, 1.442695
  %v652 = vpow.pop %v651
  %v653 = vmul.f32 %v537, 1.442695
  %v654 = vpow.pop %v653
  %v655 = vmul.f32 %v538, 1.442695
  %v656 = vpow.pop %v655
  %v657 = vmul.f32 %v539, 1.442695
  %v658 = vpow.pop %v657
  %v659 = vmul.f32 %v540, 1.442695
  %v660 = vpow.pop %v659
  %v661 = vmul.f32 %v541, 1.442695
  %v662 = vpow.pop %v661
  %v663 = vmul.f32 %v542, 1.442695
  %v664 = vpow.pop %v663
  %v665 = vmul.f32 %v543, 1.442695
  %v666 = vpow.pop %v665
  %v667 = vmul.f32 %v544, 1.442695
  %v668 = vpow.pop %v667
  %v669 = vmul.f32 %v545, 1.442695
  %v670 = vpow.pop %v669
  %v671 = vmul.f32 %v546, 1.442695
  %v672 = vpow.pop %v671
  %v673 = vmul.f32 %v547, 1.442695
  %v674 = vpow.pop %v673
  %v675 = vmul.f32 %v548, 1.442695
  %v676 = vpow.pop %v675
  %v677 = vadd.f32 %v550, 1.0
  %v678 = vadd.f32 %v552, 1.0
  %v679 = vadd.f32 %v554, 1.0
  %v680 = vadd.f32 %v556, 1.0
  %v681 = vadd.f32 %v558, 1.0
  %v682 = vadd.f32 %v560, 1.0
  %v683 = vadd.f32 %v562, 1.0
  %v684 = vadd.f32 %v564, 1.0
  %v685 = vadd.f32 %v566, 1.0
  %v686 = vadd.f32 %v568, 1.0
  %v687 = vadd.f32 %v570, 1.0
  %v688 = vadd.f32 %v572, 1.0
  %v689 = vadd.f32 %v574, 1.0
  %v690 = vadd.f32 %v576, 1.0
  %v691 = vadd.f32 %v578, 1.0
  %v692 = vadd.f32 %v580, 1.0
  %v693 = vadd.f32 %v582, 1.0
  %v694 = vadd.f32 %v584, 1.0
  %v695 = vadd.f32 %v586, 1.0
  %v696 = vadd.f32 %v588, 1.0
  %v697 = vadd.f32 %v590, 1.0
  %v698 = vadd.f32 %v592, 1.0
  %v699 = vadd.f32 %v594, 1.0
  %v700 = vadd.f32 %v596, 1.0
  %v701 = vadd.f32 %v598, 1.0
  %v702 = vadd.f32 %v600, 1.0
  %v703 = vadd.f32 %v602, 1.0
  %v704 = vadd.f32 %v604, 1.0
  %v705 = vadd.f32 %v606, 1.0
  %v706 = vadd.f32 %v608, 1.0
  %v707 = vadd.f32 %v610, 1.0
  %v708 = vadd.f32 %v612, 1.0
  %v709 = vadd.f32 %v614, 1.0
  %v710 = vadd.f32 %v616, 1.0
  %v711 = vadd.f32 %v618, 1.0
  %v712 = vadd.f32 %v620, 1.0
  %v713 = vadd.f32 %v622, 1.0
  %v714 = vadd.f32 %v624, 1.0
  %v715 = vadd.f32 %v626, 1.0
  %v716 = vadd.f32 %v628, 1.0
  %v717 = vadd.f32 %v630, 1.0
  %v718 = vadd.f32 %v632, 1.0
  %v719 = vadd.f32 %v634, 1.0
  %v720 = vadd.f32 %v636, 1.0
  %v721 = vadd.f32 %v638, 1.0
  %v722 = vadd.f32 %v640, 1.0
  %v723 = vadd.f32 %v642, 1.0
  %v724 = vadd.f32 %v644, 1.0
  %v725 = vadd.f32 %v646, 1.0
  %v726 = vadd.f32 %v648, 1.0
  %v727 = vadd.f32 %v650, 1.0
  %v728 = vadd.f32 %v652, 1.0
  %v729 = vadd.f32 %v654, 1.0
  %v730 = vadd.f32 %v656, 1.0
  %v731 = vadd.f32 %v658, 1.0
  %v732 = vadd.f32 %v660, 1.0
  %v733 = vadd.f32 %v662, 1.0
  %v734 = vadd.f32 %v664, 1.0
  %v735 = vadd.f32 %v666, 1.0
  %v736 = vadd.f32 %v668, 1.0
  %v737 = vadd.f32 %v670, 1.0
  %v738 = vadd.f32 %v672, 1.0
  %v739 = vadd.f32 %v674, 1.0
  %v740 = vadd.f32 %v676, 1.0
  %v741 = vrcp.pop %v677
  %v742 = vmul.f32 %v677, %v741
  %v743 = vsub.f32 1.0, %v742
  %v744 = vmul.f32 %v741, %v743
  %v745 = vadd.f32 %v741, %v744
  %vm746 = vweird.f32 %v677
  %vm747 = vweird.f32 %v741
  %vm748 = vmor %vm746, %vm747
  %v749 = vsel %vm748, %v741, %v745
  %v750 = vand.u32 2147483647, %v677
  %vm751 = vcmp.eq.f32.partialorder %v750, 8.507059e+37
  %v752 = vand.u32 %v677, 2147483648
  %v753 = vor.u32 1.1754944e-38, %v752
  %v754 = vsel %vm751, %v753, %v749
  %v755 = vmul.f32 1.0, %v754
  %v756 = vrcp.pop %v678
  %v757 = vmul.f32 %v678, %v756
  %v758 = vsub.f32 1.0, %v757
  %v759 = vmul.f32 %v756, %v758
  %v760 = vadd.f32 %v756, %v759
  %vm761 = vweird.f32 %v678
  %vm762 = vweird.f32 %v756
  %vm763 = vmor %vm761, %vm762
  %v764 = vsel %vm763, %v756, %v760
  %v765 = vand.u32 2147483647, %v678
  %vm766 = vcmp.eq.f32.partialorder %v765, 8.507059e+37
  %v767 = vand.u32 %v678, 2147483648
  %v768 = vor.u32 1.1754944e-38, %v767
  %v769 = vsel %vm766, %v768, %v764
  %v770 = vmul.f32 1.0, %v769
  %v771 = vrcp.pop %v679
  %v772 = vmul.f32 %v679, %v771
  %v773 = vsub.f32 1.0, %v772
  %v774 = vmul.f32 %v771, %v773
  %v775 = vadd.f32 %v771, %v774
  %vm776 = vweird.f32 %v679
  %vm777 = vweird.f32 %v771
  %vm778 = vmor %vm776, %vm777
  %v779 = vsel %vm778, %v771, %v775
  %v780 = vand.u32 2147483647, %v679
  %vm781 = vcmp.eq.f32.partialorder %v780, 8.507059e+37
  %v782 = vand.u32 %v679, 2147483648
  %v783 = vor.u32 1.1754944e-38, %v782
  %v784 = vsel %vm781, %v783, %v779
  %v785 = vmul.f32 1.0, %v784
  %v786 = vrcp.pop %v680
  %v787 = vmul.f32 %v680, %v786
  %v788 = vsub.f32 1.0, %v787
  %v789 = vmul.f32 %v786, %v788
  %v790 = vadd.f32 %v786, %v789
  %vm791 = vweird.f32 %v680
  %vm792 = vweird.f32 %v786
  %vm793 = vmor %vm791, %vm792
  %v794 = vsel %vm793, %v786, %v790
  %v795 = vand.u32 2147483647, %v680
  %vm796 = vcmp.eq.f32.partialorder %v795, 8.507059e+37
  %v797 = vand.u32 %v680, 2147483648
  %v798 = vor.u32 1.1754944e-38, %v797
  %v799 = vsel %vm796, %v798, %v794
  %v800 = vmul.f32 1.0, %v799
  %v801 = vrcp.pop %v681
  %v802 = vmul.f32 %v681, %v801
  %v803 = vsub.f32 1.0, %v802
  %v804 = vmul.f32 %v801, %v803
  %v805 = vadd.f32 %v801, %v804
  %vm806 = vweird.f32 %v681
  %vm807 = vweird.f32 %v801
  %vm808 = vmor %vm806, %vm807
  %v809 = vsel %vm808, %v801, %v805
  %v810 = vand.u32 2147483647, %v681
  %vm811 = vcmp.eq.f32.partialorder %v810, 8.507059e+37
  %v812 = vand.u32 %v681, 2147483648
  %v813 = vor.u32 1.1754944e-38, %v812
  %v814 = vsel %vm811, %v813, %v809
  %v815 = vmul.f32 1.0, %v814
  %v816 = vrcp.pop %v682
  %v817 = vmul.f32 %v682, %v816
  %v818 = vsub.f32 1.0, %v817
  %v819 = vmul.f32 %v816, %v818
  %v820 = vadd.f32 %v816, %v819
  %vm821 = vweird.f32 %v682
  %vm822 = vweird.f32 %v816
  %vm823 = vmor %vm821, %vm822
  %v824 = vsel %vm823, %v816, %v820
  %v825 = vand.u32 2147483647, %v682
  %vm826 = vcmp.eq.f32.partialorder %v825, 8.507059e+37
  %v827 = vand.u32 %v682, 2147483648
  %v828 = vor.u32 1.1754944e-38, %v827
  %v829 = vsel %vm826, %v828, %v824
  %v830 = vmul.f32 1.0, %v829
  %v831 = vrcp.pop %v683
  %v832 = vmul.f32 %v683, %v831
  %v833 = vsub.f32 1.0, %v832
  %v834 = vmul.f32 %v831, %v833
  %v835 = vadd.f32 %v831, %v834
  %vm836 = vweird.f32 %v683
  %vm837 = vweird.f32 %v831
  %vm838 = vmor %vm836, %vm837
  %v839 = vsel %vm838, %v831, %v835
  %v840 = vand.u32 2147483647, %v683
  %vm841 = vcmp.eq.f32.partialorder %v840, 8.507059e+37
  %v842 = vand.u32 %v683, 2147483648
  %v843 = vor.u32 1.1754944e-38, %v842
  %v844 = vsel %vm841, %v843, %v839
  %v845 = vmul.f32 1.0, %v844
  %v846 = vrcp.pop %v684
  %v847 = vmul.f32 %v684, %v846
  %v848 = vsub.f32 1.0, %v847
  %v849 = vmul.f32 %v846, %v848
  %v850 = vadd.f32 %v846, %v849
  %vm851 = vweird.f32 %v684
  %vm852 = vweird.f32 %v846
  %vm853 = vmor %vm851, %vm852
  %v854 = vsel %vm853, %v846, %v850
  %v855 = vand.u32 2147483647, %v684
  %vm856 = vcmp.eq.f32.partialorder %v855, 8.507059e+37
  %v857 = vand.u32 %v684, 2147483648
  %v858 = vor.u32 1.1754944e-38, %v857
  %v859 = vsel %vm856, %v858, %v854
  %v860 = vmul.f32 1.0, %v859
  %v861 = vrcp.pop %v685
  %v862 = vmul.f32 %v685, %v861
  %v863 = vsub.f32 1.0, %v862
  %v864 = vmul.f32 %v861, %v863
  %v865 = vadd.f32 %v861, %v864
  %vm866 = vweird.f32 %v685
  %vm867 = vweird.f32 %v861
  %vm868 = vmor %vm866, %vm867
  %v869 = vsel %vm868, %v861, %v865
  %v870 = vand.u32 2147483647, %v685
  %vm871 = vcmp.eq.f32.partialorder %v870, 8.507059e+37
  %v872 = vand.u32 %v685, 2147483648
  %v873 = vor.u32 1.1754944e-38, %v872
  %v874 = vsel %vm871, %v873, %v869
  %v875 = vmul.f32 1.0, %v874
  %v876 = vrcp.pop %v686
  %v877 = vmul.f32 %v686, %v876
  %v878 = vsub.f32 1.0, %v877
  %v879 = vmul.f32 %v876, %v878
  %v880 = vadd.f32 %v876, %v879
  %vm881 = vweird.f32 %v686
  %vm882 = vweird.f32 %v876
  %vm883 = vmor %vm881, %vm882
  %v884 = vsel %vm883, %v876, %v880
  %v885 = vand.u32 2147483647, %v686
  %vm886 = vcmp.eq.f32.partialorder %v885, 8.507059e+37
  %v887 = vand.u32 %v686, 2147483648
  %v888 = vor.u32 1.1754944e-38, %v887
  %v889 = vsel %vm886, %v888, %v884
  %v890 = vmul.f32 1.0, %v889
  %v891 = vrcp.pop %v687
  %v892 = vmul.f32 %v687, %v891
  %v893 = vsub.f32 1.0, %v892
  %v894 = vmul.f32 %v891, %v893
  %v895 = vadd.f32 %v891, %v894
  %vm896 = vweird.f32 %v687
  %vm897 = vweird.f32 %v891
  %vm898 = vmor %vm896, %vm897
  %v899 = vsel %vm898, %v891, %v895
  %v900 = vand.u32 2147483647, %v687
  %vm901 = vcmp.eq.f32.partialorder %v900, 8.507059e+37
  %v902 = vand.u32 %v687, 2147483648
  %v903 = vor.u32 1.1754944e-38, %v902
  %v904 = vsel %vm901, %v903, %v899
  %v905 = vmul.f32 1.0, %v904
  %v906 = vrcp.pop %v688
  %v907 = vmul.f32 %v688, %v906
  %v908 = vsub.f32 1.0, %v907
  %v909 = vmul.f32 %v906, %v908
  %v910 = vadd.f32 %v906, %v909
  %vm911 = vweird.f32 %v688
  %vm912 = vweird.f32 %v906
  %vm913 = vmor %vm911, %vm912
  %v914 = vsel %vm913, %v906, %v910
  %v915 = vand.u32 2147483647, %v688
  %vm916 = vcmp.eq.f32.partialorder %v915, 8.507059e+37
  %v917 = vand.u32 %v688, 2147483648
  %v918 = vor.u32 1.1754944e-38, %v917
  %v919 = vsel %vm916, %v918, %v914
  %v920 = vmul.f32 1.0, %v919
  %v921 = vrcp.pop %v689
  %v922 = vmul.f32 %v689, %v921
  %v923 = vsub.f32 1.0, %v922
  %v924 = vmul.f32 %v921, %v923
  %v925 = vadd.f32 %v921, %v924
  %vm926 = vweird.f32 %v689
  %vm927 = vweird.f32 %v921
  %vm928 = vmor %vm926, %vm927
  %v929 = vsel %vm928, %v921, %v925
  %v930 = vand.u32 2147483647, %v689
  %vm931 = vcmp.eq.f32.partialorder %v930, 8.507059e+37
  %v932 = vand.u32 %v689, 2147483648
  %v933 = vor.u32 1.1754944e-38, %v932
  %v934 = vsel %vm931, %v933, %v929
  %v935 = vmul.f32 1.0, %v934
  %v936 = vrcp.pop %v690
  %v937 = vmul.f32 %v690, %v936
  %v938 = vsub.f32 1.0, %v937
  %v939 = vmul.f32 %v936, %v938
  %v940 = vadd.f32 %v936, %v939
  %vm941 = vweird.f32 %v690
  %vm942 = vweird.f32 %v936
  %vm943 = vmor %vm941, %vm942
  %v944 = vsel %vm943, %v936, %v940
  %v945 = vand.u32 2147483647, %v690
  %vm946 = vcmp.eq.f32.partialorder %v945, 8.507059e+37
  %v947 = vand.u32 %v690, 2147483648
  %v948 = vor.u32 1.1754944e-38, %v947
  %v949 = vsel %vm946, %v948, %v944
  %v950 = vmul.f32 1.0, %v949
  %v951 = vrcp.pop %v691
  %v952 = vmul.f32 %v691, %v951
  %v953 = vsub.f32 1.0, %v952
  %v954 = vmul.f32 %v951, %v953
  %v955 = vadd.f32 %v951, %v954
  %vm956 = vweird.f32 %v691
  %vm957 = vweird.f32 %v951
  %vm958 = vmor %vm956, %vm957
  %v959 = vsel %vm958, %v951, %v955
  %v960 = vand.u32 2147483647, %v691
  %vm961 = vcmp.eq.f32.partialorder %v960, 8.507059e+37
  %v962 = vand.u32 %v691, 2147483648
  %v963 = vor.u32 1.1754944e-38, %v962
  %v964 = vsel %vm961, %v963, %v959
  %v965 = vmul.f32 1.0, %v964
  %v966 = vrcp.pop %v692
  %v967 = vmul.f32 %v692, %v966
  %v968 = vsub.f32 1.0, %v967
  %v969 = vmul.f32 %v966, %v968
  %v970 = vadd.f32 %v966, %v969
  %vm971 = vweird.f32 %v692
  %vm972 = vweird.f32 %v966
  %vm973 = vmor %vm971, %vm972
  %v974 = vsel %vm973, %v966, %v970
  %v975 = vand.u32 2147483647, %v692
  %vm976 = vcmp.eq.f32.partialorder %v975, 8.507059e+37
  %v977 = vand.u32 %v692, 2147483648
  %v978 = vor.u32 1.1754944e-38, %v977
  %v979 = vsel %vm976, %v978, %v974
  %v980 = vmul.f32 1.0, %v979
  %v981 = vrcp.pop %v693
  %v982 = vmul.f32 %v693, %v981
  %v983 = vsub.f32 1.0, %v982
  %v984 = vmul.f32 %v981, %v983
  %v985 = vadd.f32 %v981, %v984
  %vm986 = vweird.f32 %v693
  %vm987 = vweird.f32 %v981
  %vm988 = vmor %vm986, %vm987
  %v989 = vsel %vm988, %v981, %v985
  %v990 = vand.u32 2147483647, %v693
  %vm991 = vcmp.eq.f32.partialorder %v990, 8.507059e+37
  %v992 = vand.u32 %v693, 2147483648
  %v993 = vor.u32 1.1754944e-38, %v992
  %v994 = vsel %vm991, %v993, %v989
  %v995 = vmul.f32 1.0, %v994
  %v996 = vrcp.pop %v694
  %v997 = vmul.f32 %v694, %v996
  %v998 = vsub.f32 1.0, %v997
  %v999 = vmul.f32 %v996, %v998
  %v1000 = vadd.f32 %v996, %v999
  %vm1001 = vweird.f32 %v694
  %vm1002 = vweird.f32 %v996
  %vm1003 = vmor %vm1001, %vm1002
  %v1004 = vsel %vm1003, %v996, %v1000
  %v1005 = vand.u32 2147483647, %v694
  %vm1006 = vcmp.eq.f32.partialorder %v1005, 8.507059e+37
  %v1007 = vand.u32 %v694, 2147483648
  %v1008 = vor.u32 1.1754944e-38, %v1007
  %v1009 = vsel %vm1006, %v1008, %v1004
  %v1010 = vmul.f32 1.0, %v1009
  %v1011 = vrcp.pop %v695
  %v1012 = vmul.f32 %v695, %v1011
  %v1013 = vsub.f32 1.0, %v1012
  %v1014 = vmul.f32 %v1011, %v1013
  %v1015 = vadd.f32 %v1011, %v1014
  %vm1016 = vweird.f32 %v695
  %vm1017 = vweird.f32 %v1011
  %vm1018 = vmor %vm1016, %vm1017
  %v1019 = vsel %vm1018, %v1011, %v1015
  %v1020 = vand.u32 2147483647, %v695
  %vm1021 = vcmp.eq.f32.partialorder %v1020, 8.507059e+37
  %v1022 = vand.u32 %v695, 2147483648
  %v1023 = vor.u32 1.1754944e-38, %v1022
  %v1024 = vsel %vm1021, %v1023, %v1019
  %v1025 = vmul.f32 1.0, %v1024
  %v1026 = vrcp.pop %v696
  %v1027 = vmul.f32 %v696, %v1026
  %v1028 = vsub.f32 1.0, %v1027
  %v1029 = vmul.f32 %v1026, %v1028
  %v1030 = vadd.f32 %v1026, %v1029
  %vm1031 = vweird.f32 %v696
  %vm1032 = vweird.f32 %v1026
  %vm1033 = vmor %vm1031, %vm1032
  %v1034 = vsel %vm1033, %v1026, %v1030
  %v1035 = vand.u32 2147483647, %v696
  %vm1036 = vcmp.eq.f32.partialorder %v1035, 8.507059e+37
  %v1037 = vand.u32 %v696, 2147483648
  %v1038 = vor.u32 1.1754944e-38, %v1037
  %v1039 = vsel %vm1036, %v1038, %v1034
  %v1040 = vmul.f32 1.0, %v1039
  %v1041 = vrcp.pop %v697
  %v1042 = vmul.f32 %v697, %v1041
  %v1043 = vsub.f32 1.0, %v1042
  %v1044 = vmul.f32 %v1041, %v1043
  %v1045 = vadd.f32 %v1041, %v1044
  %vm1046 = vweird.f32 %v697
  %vm1047 = vweird.f32 %v1041
  %vm1048 = vmor %vm1046, %vm1047
  %v1049 = vsel %vm1048, %v1041, %v1045
  %v1050 = vand.u32 2147483647, %v697
  %vm1051 = vcmp.eq.f32.partialorder %v1050, 8.507059e+37
  %v1052 = vand.u32 %v697, 2147483648
  %v1053 = vor.u32 1.1754944e-38, %v1052
  %v1054 = vsel %vm1051, %v1053, %v1049
  %v1055 = vmul.f32 1.0, %v1054
  %v1056 = vrcp.pop %v698
  %v1057 = vmul.f32 %v698, %v1056
  %v1058 = vsub.f32 1.0, %v1057
  %v1059 = vmul.f32 %v1056, %v1058
  %v1060 = vadd.f32 %v1056, %v1059
  %vm1061 = vweird.f32 %v698
  %vm1062 = vweird.f32 %v1056
  %vm1063 = vmor %vm1061, %vm1062
  %v1064 = vsel %vm1063, %v1056, %v1060
  %v1065 = vand.u32 2147483647, %v698
  %vm1066 = vcmp.eq.f32.partialorder %v1065, 8.507059e+37
  %v1067 = vand.u32 %v698, 2147483648
  %v1068 = vor.u32 1.1754944e-38, %v1067
  %v1069 = vsel %vm1066, %v1068, %v1064
  %v1070 = vmul.f32 1.0, %v1069
  %v1071 = vrcp.pop %v699
  %v1072 = vmul.f32 %v699, %v1071
  %v1073 = vsub.f32 1.0, %v1072
  %v1074 = vmul.f32 %v1071, %v1073
  %v1075 = vadd.f32 %v1071, %v1074
  %vm1076 = vweird.f32 %v699
  %vm1077 = vweird.f32 %v1071
  %vm1078 = vmor %vm1076, %vm1077
  %v1079 = vsel %vm1078, %v1071, %v1075
  %v1080 = vand.u32 2147483647, %v699
  %vm1081 = vcmp.eq.f32.partialorder %v1080, 8.507059e+37
  %v1082 = vand.u32 %v699, 2147483648
  %v1083 = vor.u32 1.1754944e-38, %v1082
  %v1084 = vsel %vm1081, %v1083, %v1079
  %v1085 = vmul.f32 1.0, %v1084
  %v1086 = vrcp.pop %v700
  %v1087 = vmul.f32 %v700, %v1086
  %v1088 = vsub.f32 1.0, %v1087
  %v1089 = vmul.f32 %v1086, %v1088
  %v1090 = vadd.f32 %v1086, %v1089
  %vm1091 = vweird.f32 %v700
  %vm1092 = vweird.f32 %v1086
  %vm1093 = vmor %vm1091, %vm1092
  %v1094 = vsel %vm1093, %v1086, %v1090
  %v1095 = vand.u32 2147483647, %v700
  %vm1096 = vcmp.eq.f32.partialorder %v1095, 8.507059e+37
  %v1097 = vand.u32 %v700, 2147483648
  %v1098 = vor.u32 1.1754944e-38, %v1097
  %v1099 = vsel %vm1096, %v1098, %v1094
  %v1100 = vmul.f32 1.0, %v1099
  %v1101 = vrcp.pop %v701
  %v1102 = vmul.f32 %v701, %v1101
  %v1103 = vsub.f32 1.0, %v1102
  %v1104 = vmul.f32 %v1101, %v1103
  %v1105 = vadd.f32 %v1101, %v1104
  %vm1106 = vweird.f32 %v701
  %vm1107 = vweird.f32 %v1101
  %vm1108 = vmor %vm1106, %vm1107
  %v1109 = vsel %vm1108, %v1101, %v1105
  %v1110 = vand.u32 2147483647, %v701
  %vm1111 = vcmp.eq.f32.partialorder %v1110, 8.507059e+37
  %v1112 = vand.u32 %v701, 2147483648
  %v1113 = vor.u32 1.1754944e-38, %v1112
  %v1114 = vsel %vm1111, %v1113, %v1109
  %v1115 = vmul.f32 1.0, %v1114
  %v1116 = vrcp.pop %v702
  %v1117 = vmul.f32 %v702, %v1116
  %v1118 = vsub.f32 1.0, %v1117
  %v1119 = vmul.f32 %v1116, %v1118
  %v1120 = vadd.f32 %v1116, %v1119
  %vm1121 = vweird.f32 %v702
  %vm1122 = vweird.f32 %v1116
  %vm1123 = vmor %vm1121, %vm1122
  %v1124 = vsel %vm1123, %v1116, %v1120
  %v1125 = vand.u32 2147483647, %v702
  %vm1126 = vcmp.eq.f32.partialorder %v1125, 8.507059e+37
  %v1127 = vand.u32 %v702, 2147483648
  %v1128 = vor.u32 1.1754944e-38, %v1127
  %v1129 = vsel %vm1126, %v1128, %v1124
  %v1130 = vmul.f32 1.0, %v1129
  %v1131 = vrcp.pop %v703
  %v1132 = vmul.f32 %v703, %v1131
  %v1133 = vsub.f32 1.0, %v1132
  %v1134 = vmul.f32 %v1131, %v1133
  %v1135 = vadd.f32 %v1131, %v1134
  %vm1136 = vweird.f32 %v703
  %vm1137 = vweird.f32 %v1131
  %vm1138 = vmor %vm1136, %vm1137
  %v1139 = vsel %vm1138, %v1131, %v1135
  %v1140 = vand.u32 2147483647, %v703
  %vm1141 = vcmp.eq.f32.partialorder %v1140, 8.507059e+37
  %v1142 = vand.u32 %v703, 2147483648
  %v1143 = vor.u32 1.1754944e-38, %v1142
  %v1144 = vsel %vm1141, %v1143, %v1139
  %v1145 = vmul.f32 1.0, %v1144
  %v1146 = vrcp.pop %v704
  %v1147 = vmul.f32 %v704, %v1146
  %v1148 = vsub.f32 1.0, %v1147
  %v1149 = vmul.f32 %v1146, %v1148
  %v1150 = vadd.f32 %v1146, %v1149
  %vm1151 = vweird.f32 %v704
  %vm1152 = vweird.f32 %v1146
  %vm1153 = vmor %vm1151, %vm1152
  %v1154 = vsel %vm1153, %v1146, %v1150
  %v1155 = vand.u32 2147483647, %v704
  %vm1156 = vcmp.eq.f32.partialorder %v1155, 8.507059e+37
  %v1157 = vand.u32 %v704, 2147483648
  %v1158 = vor.u32 1.1754944e-38, %v1157
  %v1159 = vsel %vm1156, %v1158, %v1154
  %v1160 = vmul.f32 1.0, %v1159
  %v1161 = vrcp.pop %v705
  %v1162 = vmul.f32 %v705, %v1161
  %v1163 = vsub.f32 1.0, %v1162
  %v1164 = vmul.f32 %v1161, %v1163
  %v1165 = vadd.f32 %v1161, %v1164
  %vm1166 = vweird.f32 %v705
  %vm1167 = vweird.f32 %v1161
  %vm1168 = vmor %vm1166, %vm1167
  %v1169 = vsel %vm1168, %v1161, %v1165
  %v1170 = vand.u32 2147483647, %v705
  %vm1171 = vcmp.eq.f32.partialorder %v1170, 8.507059e+37
  %v1172 = vand.u32 %v705, 2147483648
  %v1173 = vor.u32 1.1754944e-38, %v1172
  %v1174 = vsel %vm1171, %v1173, %v1169
  %v1175 = vmul.f32 1.0, %v1174
  %v1176 = vrcp.pop %v706
  %v1177 = vmul.f32 %v706, %v1176
  %v1178 = vsub.f32 1.0, %v1177
  %v1179 = vmul.f32 %v1176, %v1178
  %v1180 = vadd.f32 %v1176, %v1179
  %vm1181 = vweird.f32 %v706
  %vm1182 = vweird.f32 %v1176
  %vm1183 = vmor %vm1181, %vm1182
  %v1184 = vsel %vm1183, %v1176, %v1180
  %v1185 = vand.u32 2147483647, %v706
  %vm1186 = vcmp.eq.f32.partialorder %v1185, 8.507059e+37
  %v1187 = vand.u32 %v706, 2147483648
  %v1188 = vor.u32 1.1754944e-38, %v1187
  %v1189 = vsel %vm1186, %v1188, %v1184
  %v1190 = vmul.f32 1.0, %v1189
  %v1191 = vrcp.pop %v707
  %v1192 = vmul.f32 %v707, %v1191
  %v1193 = vsub.f32 1.0, %v1192
  %v1194 = vmul.f32 %v1191, %v1193
  %v1195 = vadd.f32 %v1191, %v1194
  %vm1196 = vweird.f32 %v707
  %vm1197 = vweird.f32 %v1191
  %vm1198 = vmor %vm1196, %vm1197
  %v1199 = vsel %vm1198, %v1191, %v1195
  %v1200 = vand.u32 2147483647, %v707
  %vm1201 = vcmp.eq.f32.partialorder %v1200, 8.507059e+37
  %v1202 = vand.u32 %v707, 2147483648
  %v1203 = vor.u32 1.1754944e-38, %v1202
  %v1204 = vsel %vm1201, %v1203, %v1199
  %v1205 = vmul.f32 1.0, %v1204
  %v1206 = vrcp.pop %v708
  %v1207 = vmul.f32 %v708, %v1206
  %v1208 = vsub.f32 1.0, %v1207
  %v1209 = vmul.f32 %v1206, %v1208
  %v1210 = vadd.f32 %v1206, %v1209
  %vm1211 = vweird.f32 %v708
  %vm1212 = vweird.f32 %v1206
  %vm1213 = vmor %vm1211, %vm1212
  %v1214 = vsel %vm1213, %v1206, %v1210
  %v1215 = vand.u32 2147483647, %v708
  %vm1216 = vcmp.eq.f32.partialorder %v1215, 8.507059e+37
  %v1217 = vand.u32 %v708, 2147483648
  %v1218 = vor.u32 1.1754944e-38, %v1217
  %v1219 = vsel %vm1216, %v1218, %v1214
  %v1220 = vmul.f32 1.0, %v1219
  %v1221 = vrcp.pop %v709
  %v1222 = vmul.f32 %v709, %v1221
  %v1223 = vsub.f32 1.0, %v1222
  %v1224 = vmul.f32 %v1221, %v1223
  %v1225 = vadd.f32 %v1221, %v1224
  %vm1226 = vweird.f32 %v709
  %vm1227 = vweird.f32 %v1221
  %vm1228 = vmor %vm1226, %vm1227
  %v1229 = vsel %vm1228, %v1221, %v1225
  %v1230 = vand.u32 2147483647, %v709
  %vm1231 = vcmp.eq.f32.partialorder %v1230, 8.507059e+37
  %v1232 = vand.u32 %v709, 2147483648
  %v1233 = vor.u32 1.1754944e-38, %v1232
  %v1234 = vsel %vm1231, %v1233, %v1229
  %v1235 = vmul.f32 1.0, %v1234
  %v1236 = vrcp.pop %v710
  %v1237 = vmul.f32 %v710, %v1236
  %v1238 = vsub.f32 1.0, %v1237
  %v1239 = vmul.f32 %v1236, %v1238
  %v1240 = vadd.f32 %v1236, %v1239
  %vm1241 = vweird.f32 %v710
  %vm1242 = vweird.f32 %v1236
  %vm1243 = vmor %vm1241, %vm1242
  %v1244 = vsel %vm1243, %v1236, %v1240
  %v1245 = vand.u32 2147483647, %v710
  %vm1246 = vcmp.eq.f32.partialorder %v1245, 8.507059e+37
  %v1247 = vand.u32 %v710, 2147483648
  %v1248 = vor.u32 1.1754944e-38, %v1247
  %v1249 = vsel %vm1246, %v1248, %v1244
  %v1250 = vmul.f32 1.0, %v1249
  %v1251 = vrcp.pop %v711
  %v1252 = vmul.f32 %v711, %v1251
  %v1253 = vsub.f32 1.0, %v1252
  %v1254 = vmul.f32 %v1251, %v1253
  %v1255 = vadd.f32 %v1251, %v1254
  %vm1256 = vweird.f32 %v711
  %vm1257 = vweird.f32 %v1251
  %vm1258 = vmor %vm1256, %vm1257
  %v1259 = vsel %vm1258, %v1251, %v1255
  %v1260 = vand.u32 2147483647, %v711
  %vm1261 = vcmp.eq.f32.partialorder %v1260, 8.507059e+37
  %v1262 = vand.u32 %v711, 2147483648
  %v1263 = vor.u32 1.1754944e-38, %v1262
  %v1264 = vsel %vm1261, %v1263, %v1259
  %v1265 = vmul.f32 1.0, %v1264
  %v1266 = vrcp.pop %v712
  %v1267 = vmul.f32 %v712, %v1266
  %v1268 = vsub.f32 1.0, %v1267
  %v1269 = vmul.f32 %v1266, %v1268
  %v1270 = vadd.f32 %v1266, %v1269
  %vm1271 = vweird.f32 %v712
  %vm1272 = vweird.f32 %v1266
  %vm1273 = vmor %vm1271, %vm1272
  %v1274 = vsel %vm1273, %v1266, %v1270
  %v1275 = vand.u32 2147483647, %v712
  %vm1276 = vcmp.eq.f32.partialorder %v1275, 8.507059e+37
  %v1277 = vand.u32 %v712, 2147483648
  %v1278 = vor.u32 1.1754944e-38, %v1277
  %v1279 = vsel %vm1276, %v1278, %v1274
  %v1280 = vmul.f32 1.0, %v1279
  %v1281 = vrcp.pop %v713
  %v1282 = vmul.f32 %v713, %v1281
  %v1283 = vsub.f32 1.0, %v1282
  %v1284 = vmul.f32 %v1281, %v1283
  %v1285 = vadd.f32 %v1281, %v1284
  %vm1286 = vweird.f32 %v713
  %vm1287 = vweird.f32 %v1281
  %vm1288 = vmor %vm1286, %vm1287
  %v1289 = vsel %vm1288, %v1281, %v1285
  %v1290 = vand.u32 2147483647, %v713
  %vm1291 = vcmp.eq.f32.partialorder %v1290, 8.507059e+37
  %v1292 = vand.u32 %v713, 2147483648
  %v1293 = vor.u32 1.1754944e-38, %v1292
  %v1294 = vsel %vm1291, %v1293, %v1289
  %v1295 = vmul.f32 1.0, %v1294
  %v1296 = vrcp.pop %v714
  %v1297 = vmul.f32 %v714, %v1296
  %v1298 = vsub.f32 1.0, %v1297
  %v1299 = vmul.f32 %v1296, %v1298
  %v1300 = vadd.f32 %v1296, %v1299
  %vm1301 = vweird.f32 %v714
  %vm1302 = vweird.f32 %v1296
  %vm1303 = vmor %vm1301, %vm1302
  %v1304 = vsel %vm1303, %v1296, %v1300
  %v1305 = vand.u32 2147483647, %v714
  %vm1306 = vcmp.eq.f32.partialorder %v1305, 8.507059e+37
  %v1307 = vand.u32 %v714, 2147483648
  %v1308 = vor.u32 1.1754944e-38, %v1307
  %v1309 = vsel %vm1306, %v1308, %v1304
  %v1310 = vmul.f32 1.0, %v1309
  %v1311 = vrcp.pop %v715
  %v1312 = vmul.f32 %v715, %v1311
  %v1313 = vsub.f32 1.0, %v1312
  %v1314 = vmul.f32 %v1311, %v1313
  %v1315 = vadd.f32 %v1311, %v1314
  %vm1316 = vweird.f32 %v715
  %vm1317 = vweird.f32 %v1311
  %vm1318 = vmor %vm1316, %vm1317
  %v1319 = vsel %vm1318, %v1311, %v1315
  %v1320 = vand.u32 2147483647, %v715
  %vm1321 = vcmp.eq.f32.partialorder %v1320, 8.507059e+37
  %v1322 = vand.u32 %v715, 2147483648
  %v1323 = vor.u32 1.1754944e-38, %v1322
  %v1324 = vsel %vm1321, %v1323, %v1319
  %v1325 = vmul.f32 1.0, %v1324
  %v1326 = vrcp.pop %v716
  %v1327 = vmul.f32 %v716, %v1326
  %v1328 = vsub.f32 1.0, %v1327
  %v1329 = vmul.f32 %v1326, %v1328
  %v1330 = vadd.f32 %v1326, %v1329
  %vm1331 = vweird.f32 %v716
  %vm1332 = vweird.f32 %v1326
  %vm1333 = vmor %vm1331, %vm1332
  %v1334 = vsel %vm1333, %v1326, %v1330
  %v1335 = vand.u32 2147483647, %v716
  %vm1336 = vcmp.eq.f32.partialorder %v1335, 8.507059e+37
  %v1337 = vand.u32 %v716, 2147483648
  %v1338 = vor.u32 1.1754944e-38, %v1337
  %v1339 = vsel %vm1336, %v1338, %v1334
  %v1340 = vmul.f32 1.0, %v1339
  %v1341 = vrcp.pop %v717
  %v1342 = vmul.f32 %v717, %v1341
  %v1343 = vsub.f32 1.0, %v1342
  %v1344 = vmul.f32 %v1341, %v1343
  %v1345 = vadd.f32 %v1341, %v1344
  %vm1346 = vweird.f32 %v717
  %vm1347 = vweird.f32 %v1341
  %vm1348 = vmor %vm1346, %vm1347
  %v1349 = vsel %vm1348, %v1341, %v1345
  %v1350 = vand.u32 2147483647, %v717
  %vm1351 = vcmp.eq.f32.partialorder %v1350, 8.507059e+37
  %v1352 = vand.u32 %v717, 2147483648
  %v1353 = vor.u32 1.1754944e-38, %v1352
  %v1354 = vsel %vm1351, %v1353, %v1349
  %v1355 = vmul.f32 1.0, %v1354
  %v1356 = vrcp.pop %v718
  %v1357 = vmul.f32 %v718, %v1356
  %v1358 = vsub.f32 1.0, %v1357
  %v1359 = vmul.f32 %v1356, %v1358
  %v1360 = vadd.f32 %v1356, %v1359
  %vm1361 = vweird.f32 %v718
  %vm1362 = vweird.f32 %v1356
  %vm1363 = vmor %vm1361, %vm1362
  %v1364 = vsel %vm1363, %v1356, %v1360
  %v1365 = vand.u32 2147483647, %v718
  %vm1366 = vcmp.eq.f32.partialorder %v1365, 8.507059e+37
  %v1367 = vand.u32 %v718, 2147483648
  %v1368 = vor.u32 1.1754944e-38, %v1367
  %v1369 = vsel %vm1366, %v1368, %v1364
  %v1370 = vmul.f32 1.0, %v1369
  %v1371 = vrcp.pop %v719
  %v1372 = vmul.f32 %v719, %v1371
  %v1373 = vsub.f32 1.0, %v1372
  %v1374 = vmul.f32 %v1371, %v1373
  %v1375 = vadd.f32 %v1371, %v1374
  %vm1376 = vweird.f32 %v719
  %vm1377 = vweird.f32 %v1371
  %vm1378 = vmor %vm1376, %vm1377
  %v1379 = vsel %vm1378, %v1371, %v1375
  %v1380 = vand.u32 2147483647, %v719
  %vm1381 = vcmp.eq.f32.partialorder %v1380, 8.507059e+37
  %v1382 = vand.u32 %v719, 2147483648
  %v1383 = vor.u32 1.1754944e-38, %v1382
  %v1384 = vsel %vm1381, %v1383, %v1379
  %v1385 = vmul.f32 1.0, %v1384
  %v1386 = vrcp.pop %v720
  %v1387 = vmul.f32 %v720, %v1386
  %v1388 = vsub.f32 1.0, %v1387
  %v1389 = vmul.f32 %v1386, %v1388
  %v1390 = vadd.f32 %v1386, %v1389
  %vm1391 = vweird.f32 %v720
  %vm1392 = vweird.f32 %v1386
  %vm1393 = vmor %vm1391, %vm1392
  %v1394 = vsel %vm1393, %v1386, %v1390
  %v1395 = vand.u32 2147483647, %v720
  %vm1396 = vcmp.eq.f32.partialorder %v1395, 8.507059e+37
  %v1397 = vand.u32 %v720, 2147483648
  %v1398 = vor.u32 1.1754944e-38, %v1397
  %v1399 = vsel %vm1396, %v1398, %v1394
  %v1400 = vmul.f32 1.0, %v1399
  %v1401 = vrcp.pop %v721
  %v1402 = vmul.f32 %v721, %v1401
  %v1403 = vsub.f32 1.0, %v1402
  %v1404 = vmul.f32 %v1401, %v1403
  %v1405 = vadd.f32 %v1401, %v1404
  %vm1406 = vweird.f32 %v721
  %vm1407 = vweird.f32 %v1401
  %vm1408 = vmor %vm1406, %vm1407
  %v1409 = vsel %vm1408, %v1401, %v1405
  %v1410 = vand.u32 2147483647, %v721
  %vm1411 = vcmp.eq.f32.partialorder %v1410, 8.507059e+37
  %v1412 = vand.u32 %v721, 2147483648
  %v1413 = vor.u32 1.1754944e-38, %v1412
  %v1414 = vsel %vm1411, %v1413, %v1409
  %v1415 = vmul.f32 1.0, %v1414
  %v1416 = vrcp.pop %v722
  %v1417 = vmul.f32 %v722, %v1416
  %v1418 = vsub.f32 1.0, %v1417
  %v1419 = vmul.f32 %v1416, %v1418
  %v1420 = vadd.f32 %v1416, %v1419
  %vm1421 = vweird.f32 %v722
  %vm1422 = vweird.f32 %v1416
  %vm1423 = vmor %vm1421, %vm1422
  %v1424 = vsel %vm1423, %v1416, %v1420
  %v1425 = vand.u32 2147483647, %v722
  %vm1426 = vcmp.eq.f32.partialorder %v1425, 8.507059e+37
  %v1427 = vand.u32 %v722, 2147483648
  %v1428 = vor.u32 1.1754944e-38, %v1427
  %v1429 = vsel %vm1426, %v1428, %v1424
  %v1430 = vmul.f32 1.0, %v1429
  %v1431 = vrcp.pop %v723
  %v1432 = vmul.f32 %v723, %v1431
  %v1433 = vsub.f32 1.0, %v1432
  %v1434 = vmul.f32 %v1431, %v1433
  %v1435 = vadd.f32 %v1431, %v1434
  %vm1436 = vweird.f32 %v723
  %vm1437 = vweird.f32 %v1431
  %vm1438 = vmor %vm1436, %vm1437
  %v1439 = vsel %vm1438, %v1431, %v1435
  %v1440 = vand.u32 2147483647, %v723
  %vm1441 = vcmp.eq.f32.partialorder %v1440, 8.507059e+37
  %v1442 = vand.u32 %v723, 2147483648
  %v1443 = vor.u32 1.1754944e-38, %v1442
  %v1444 = vsel %vm1441, %v1443, %v1439
  %v1445 = vmul.f32 1.0, %v1444
  %v1446 = vrcp.pop %v724
  %v1447 = vmul.f32 %v724, %v1446
  %v1448 = vsub.f32 1.0, %v1447
  %v1449 = vmul.f32 %v1446, %v1448
  %v1450 = vadd.f32 %v1446, %v1449
  %vm1451 = vweird.f32 %v724
  %vm1452 = vweird.f32 %v1446
  %vm1453 = vmor %vm1451, %vm1452
  %v1454 = vsel %vm1453, %v1446, %v1450
  %v1455 = vand.u32 2147483647, %v724
  %vm1456 = vcmp.eq.f32.partialorder %v1455, 8.507059e+37
  %v1457 = vand.u32 %v724, 2147483648
  %v1458 = vor.u32 1.1754944e-38, %v1457
  %v1459 = vsel %vm1456, %v1458, %v1454
  %v1460 = vmul.f32 1.0, %v1459
  %v1461 = vrcp.pop %v725
  %v1462 = vmul.f32 %v725, %v1461
  %v1463 = vsub.f32 1.0, %v1462
  %v1464 = vmul.f32 %v1461, %v1463
  %v1465 = vadd.f32 %v1461, %v1464
  %vm1466 = vweird.f32 %v725
  %vm1467 = vweird.f32 %v1461
  %vm1468 = vmor %vm1466, %vm1467
  %v1469 = vsel %vm1468, %v1461, %v1465
  %v1470 = vand.u32 2147483647, %v725
  %vm1471 = vcmp.eq.f32.partialorder %v1470, 8.507059e+37
  %v1472 = vand.u32 %v725, 2147483648
  %v1473 = vor.u32 1.1754944e-38, %v1472
  %v1474 = vsel %vm1471, %v1473, %v1469
  %v1475 = vmul.f32 1.0, %v1474
  %v1476 = vrcp.pop %v726
  %v1477 = vmul.f32 %v726, %v1476
  %v1478 = vsub.f32 1.0, %v1477
  %v1479 = vmul.f32 %v1476, %v1478
  %v1480 = vadd.f32 %v1476, %v1479
  %vm1481 = vweird.f32 %v726
  %vm1482 = vweird.f32 %v1476
  %vm1483 = vmor %vm1481, %vm1482
  %v1484 = vsel %vm1483, %v1476, %v1480
  %v1485 = vand.u32 2147483647, %v726
  %vm1486 = vcmp.eq.f32.partialorder %v1485, 8.507059e+37
  %v1487 = vand.u32 %v726, 2147483648
  %v1488 = vor.u32 1.1754944e-38, %v1487
  %v1489 = vsel %vm1486, %v1488, %v1484
  %v1490 = vmul.f32 1.0, %v1489
  %v1491 = vrcp.pop %v727
  %v1492 = vmul.f32 %v727, %v1491
  %v1493 = vsub.f32 1.0, %v1492
  %v1494 = vmul.f32 %v1491, %v1493
  %v1495 = vadd.f32 %v1491, %v1494
  %vm1496 = vweird.f32 %v727
  %vm1497 = vweird.f32 %v1491
  %vm1498 = vmor %vm1496, %vm1497
  %v1499 = vsel %vm1498, %v1491, %v1495
  %v1500 = vand.u32 2147483647, %v727
  %vm1501 = vcmp.eq.f32.partialorder %v1500, 8.507059e+37
  %v1502 = vand.u32 %v727, 2147483648
  %v1503 = vor.u32 1.1754944e-38, %v1502
  %v1504 = vsel %vm1501, %v1503, %v1499
  %v1505 = vmul.f32 1.0, %v1504
  %v1506 = vrcp.pop %v728
  %v1507 = vmul.f32 %v728, %v1506
  %v1508 = vsub.f32 1.0, %v1507
  %v1509 = vmul.f32 %v1506, %v1508
  %v1510 = vadd.f32 %v1506, %v1509
  %vm1511 = vweird.f32 %v728
  %vm1512 = vweird.f32 %v1506
  %vm1513 = vmor %vm1511, %vm1512
  %v1514 = vsel %vm1513, %v1506, %v1510
  %v1515 = vand.u32 2147483647, %v728
  %vm1516 = vcmp.eq.f32.partialorder %v1515, 8.507059e+37
  %v1517 = vand.u32 %v728, 2147483648
  %v1518 = vor.u32 1.1754944e-38, %v1517
  %v1519 = vsel %vm1516, %v1518, %v1514
  %v1520 = vmul.f32 1.0, %v1519
  %v1521 = vrcp.pop %v729
  %v1522 = vmul.f32 %v729, %v1521
  %v1523 = vsub.f32 1.0, %v1522
  %v1524 = vmul.f32 %v1521, %v1523
  %v1525 = vadd.f32 %v1521, %v1524
  %vm1526 = vweird.f32 %v729
  %vm1527 = vweird.f32 %v1521
  %vm1528 = vmor %vm1526, %vm1527
  %v1529 = vsel %vm1528, %v1521, %v1525
  %v1530 = vand.u32 2147483647, %v729
  %vm1531 = vcmp.eq.f32.partialorder %v1530, 8.507059e+37
  %v1532 = vand.u32 %v729, 2147483648
  %v1533 = vor.u32 1.1754944e-38, %v1532
  %v1534 = vsel %vm1531, %v1533, %v1529
  %v1535 = vmul.f32 1.0, %v1534
  %v1536 = vrcp.pop %v730
  %v1537 = vmul.f32 %v730, %v1536
  %v1538 = vsub.f32 1.0, %v1537
  %v1539 = vmul.f32 %v1536, %v1538
  %v1540 = vadd.f32 %v1536, %v1539
  %vm1541 = vweird.f32 %v730
  %vm1542 = vweird.f32 %v1536
  %vm1543 = vmor %vm1541, %vm1542
  %v1544 = vsel %vm1543, %v1536, %v1540
  %v1545 = vand.u32 2147483647, %v730
  %vm1546 = vcmp.eq.f32.partialorder %v1545, 8.507059e+37
  %v1547 = vand.u32 %v730, 2147483648
  %v1548 = vor.u32 1.1754944e-38, %v1547
  %v1549 = vsel %vm1546, %v1548, %v1544
  %v1550 = vmul.f32 1.0, %v1549
  %v1551 = vrcp.pop %v731
  %v1552 = vmul.f32 %v731, %v1551
  %v1553 = vsub.f32 1.0, %v1552
  %v1554 = vmul.f32 %v1551, %v1553
  %v1555 = vadd.f32 %v1551, %v1554
  %vm1556 = vweird.f32 %v731
  %vm1557 = vweird.f32 %v1551
  %vm1558 = vmor %vm1556, %vm1557
  %v1559 = vsel %vm1558, %v1551, %v1555
  %v1560 = vand.u32 2147483647, %v731
  %vm1561 = vcmp.eq.f32.partialorder %v1560, 8.507059e+37
  %v1562 = vand.u32 %v731, 2147483648
  %v1563 = vor.u32 1.1754944e-38, %v1562
  %v1564 = vsel %vm1561, %v1563, %v1559
  %v1565 = vmul.f32 1.0, %v1564
  %v1566 = vrcp.pop %v732
  %v1567 = vmul.f32 %v732, %v1566
  %v1568 = vsub.f32 1.0, %v1567
  %v1569 = vmul.f32 %v1566, %v1568
  %v1570 = vadd.f32 %v1566, %v1569
  %vm1571 = vweird.f32 %v732
  %vm1572 = vweird.f32 %v1566
  %vm1573 = vmor %vm1571, %vm1572
  %v1574 = vsel %vm1573, %v1566, %v1570
  %v1575 = vand.u32 2147483647, %v732
  %vm1576 = vcmp.eq.f32.partialorder %v1575, 8.507059e+37
  %v1577 = vand.u32 %v732, 2147483648
  %v1578 = vor.u32 1.1754944e-38, %v1577
  %v1579 = vsel %vm1576, %v1578, %v1574
  %v1580 = vmul.f32 1.0, %v1579
  %v1581 = vrcp.pop %v733
  %v1582 = vmul.f32 %v733, %v1581
  %v1583 = vsub.f32 1.0, %v1582
  %v1584 = vmul.f32 %v1581, %v1583
  %v1585 = vadd.f32 %v1581, %v1584
  %vm1586 = vweird.f32 %v733
  %vm1587 = vweird.f32 %v1581
  %vm1588 = vmor %vm1586, %vm1587
  %v1589 = vsel %vm1588, %v1581, %v1585
  %v1590 = vand.u32 2147483647, %v733
  %vm1591 = vcmp.eq.f32.partialorder %v1590, 8.507059e+37
  %v1592 = vand.u32 %v733, 2147483648
  %v1593 = vor.u32 1.1754944e-38, %v1592
  %v1594 = vsel %vm1591, %v1593, %v1589
  %v1595 = vmul.f32 1.0, %v1594
  %v1596 = vrcp.pop %v734
  %v1597 = vmul.f32 %v734, %v1596
  %v1598 = vsub.f32 1.0, %v1597
  %v1599 = vmul.f32 %v1596, %v1598
  %v1600 = vadd.f32 %v1596, %v1599
  %vm1601 = vweird.f32 %v734
  %vm1602 = vweird.f32 %v1596
  %vm1603 = vmor %vm1601, %vm1602
  %v1604 = vsel %vm1603, %v1596, %v1600
  %v1605 = vand.u32 2147483647, %v734
  %vm1606 = vcmp.eq.f32.partialorder %v1605, 8.507059e+37
  %v1607 = vand.u32 %v734, 2147483648
  %v1608 = vor.u32 1.1754944e-38, %v1607
  %v1609 = vsel %vm1606, %v1608, %v1604
  %v1610 = vmul.f32 1.0, %v1609
  %v1611 = vrcp.pop %v735
  %v1612 = vmul.f32 %v735, %v1611
  %v1613 = vsub.f32 1.0, %v1612
  %v1614 = vmul.f32 %v1611, %v1613
  %v1615 = vadd.f32 %v1611, %v1614
  %vm1616 = vweird.f32 %v735
  %vm1617 = vweird.f32 %v1611
  %vm1618 = vmor %vm1616, %vm1617
  %v1619 = vsel %vm1618, %v1611, %v1615
  %v1620 = vand.u32 2147483647, %v735
  %vm1621 = vcmp.eq.f32.partialorder %v1620, 8.507059e+37
  %v1622 = vand.u32 %v735, 2147483648
  %v1623 = vor.u32 1.1754944e-38, %v1622
  %v1624 = vsel %vm1621, %v1623, %v1619
  %v1625 = vmul.f32 1.0, %v1624
  %v1626 = vrcp.pop %v736
  %v1627 = vmul.f32 %v736, %v1626
  %v1628 = vsub.f32 1.0, %v1627
  %v1629 = vmul.f32 %v1626, %v1628
  %v1630 = vadd.f32 %v1626, %v1629
  %vm1631 = vweird.f32 %v736
  %vm1632 = vweird.f32 %v1626
  %vm1633 = vmor %vm1631, %vm1632
  %v1634 = vsel %vm1633, %v1626, %v1630
  %v1635 = vand.u32 2147483647, %v736
  %vm1636 = vcmp.eq.f32.partialorder %v1635, 8.507059e+37
  %v1637 = vand.u32 %v736, 2147483648
  %v1638 = vor.u32 1.1754944e-38, %v1637
  %v1639 = vsel %vm1636, %v1638, %v1634
  %v1640 = vmul.f32 1.0, %v1639
  %v1641 = vrcp.pop %v737
  %v1642 = vmul.f32 %v737, %v1641
  %v1643 = vsub.f32 1.0, %v1642
  %v1644 = vmul.f32 %v1641, %v1643
  %v1645 = vadd.f32 %v1641, %v1644
  %vm1646 = vweird.f32 %v737
  %vm1647 = vweird.f32 %v1641
  %vm1648 = vmor %vm1646, %vm1647
  %v1649 = vsel %vm1648, %v1641, %v1645
  %v1650 = vand.u32 2147483647, %v737
  %vm1651 = vcmp.eq.f32.partialorder %v1650, 8.507059e+37
  %v1652 = vand.u32 %v737, 2147483648
  %v1653 = vor.u32 1.1754944e-38, %v1652
  %v1654 = vsel %vm1651, %v1653, %v1649
  %v1655 = vmul.f32 1.0, %v1654
  %v1656 = vrcp.pop %v738
  %v1657 = vmul.f32 %v738, %v1656
  %v1658 = vsub.f32 1.0, %v1657
  %v1659 = vmul.f32 %v1656, %v1658
  %v1660 = vadd.f32 %v1656, %v1659
  %vm1661 = vweird.f32 %v738
  %vm1662 = vweird.f32 %v1656
  %vm1663 = vmor %vm1661, %vm1662
  %v1664 = vsel %vm1663, %v1656, %v1660
  %v1665 = vand.u32 2147483647, %v738
  %vm1666 = vcmp.eq.f32.partialorder %v1665, 8.507059e+37
  %v1667 = vand.u32 %v738, 2147483648
  %v1668 = vor.u32 1.1754944e-38, %v1667
  %v1669 = vsel %vm1666, %v1668, %v1664
  %v1670 = vmul.f32 1.0, %v1669
  %v1671 = vrcp.pop %v739
  %v1672 = vmul.f32 %v739, %v1671
  %v1673 = vsub.f32 1.0, %v1672
  %v1674 = vmul.f32 %v1671, %v1673
  %v1675 = vadd.f32 %v1671, %v1674
  %vm1676 = vweird.f32 %v739
  %vm1677 = vweird.f32 %v1671
  %vm1678 = vmor %vm1676, %vm1677
  %v1679 = vsel %vm1678, %v1671, %v1675
  %v1680 = vand.u32 2147483647, %v739
  %vm1681 = vcmp.eq.f32.partialorder %v1680, 8.507059e+37
  %v1682 = vand.u32 %v739, 2147483648
  %v1683 = vor.u32 1.1754944e-38, %v1682
  %v1684 = vsel %vm1681, %v1683, %v1679
  %v1685 = vmul.f32 1.0, %v1684
  %v1686 = vrcp.pop %v740
  %v1687 = vmul.f32 %v740, %v1686
  %v1688 = vsub.f32 1.0, %v1687
  %v1689 = vmul.f32 %v1686, %v1688
  %v1690 = vadd.f32 %v1686, %v1689
  %vm1691 = vweird.f32 %v740
  %vm1692 = vweird.f32 %v1686
  %vm1693 = vmor %vm1691, %vm1692
  %v1694 = vsel %vm1693, %v1686, %v1690
  %v1695 = vand.u32 2147483647, %v740
  %vm1696 = vcmp.eq.f32.partialorder %v1695, 8.507059e+37
  %v1697 = vand.u32 %v740, 2147483648
  %v1698 = vor.u32 1.1754944e-38, %v1697
  %v1699 = vsel %vm1696, %v1698, %v1694
  %v1700 = vmul.f32 1.0, %v1699
  %v1701 = vmul.f32 %v294, %v755
  %v1702 = vmul.f32 %v297, %v770
  %v1703 = vmul.f32 %v300, %v785
  %v1704 = vmul.f32 %v303, %v800
  %v1705 = vmul.f32 %v306, %v815
  %v1706 = vmul.f32 %v309, %v830
  %v1707 = vmul.f32 %v312, %v845
  %v1708 = vmul.f32 %v315, %v860
  %v1709 = vmul.f32 %v318, %v875
  %v1710 = vmul.f32 %v321, %v890
  %v1711 = vmul.f32 %v324, %v905
  %v1712 = vmul.f32 %v327, %v920
  %v1713 = vmul.f32 %v330, %v935
  %v1714 = vmul.f32 %v333, %v950
  %v1715 = vmul.f32 %v336, %v965
  %v1716 = vmul.f32 %v339, %v980
  %v1717 = vmul.f32 %v342, %v995
  %v1718 = vmul.f32 %v345, %v1010
  %v1719 = vmul.f32 %v348, %v1025
  %v1720 = vmul.f32 %v351, %v1040
  %v1721 = vmul.f32 %v354, %v1055
  %v1722 = vmul.f32 %v357, %v1070
  %v1723 = vmul.f32 %v360, %v1085
  %v1724 = vmul.f32 %v363, %v1100
  %v1725 = vmul.f32 %v366, %v1115
  %v1726 = vmul.f32 %v369, %v1130
  %v1727 = vmul.f32 %v372, %v1145
  %v1728 = vmul.f32 %v375, %v1160
  %v1729 = vmul.f32 %v378, %v1175
  %v1730 = vmul.f32 %v381, %v1190
  %v1731 = vmul.f32 %v384, %v1205
  %v1732 = vmul.f32 %v387, %v1220
  %v1733 = vmul.f32 %v390, %v1235
  %v1734 = vmul.f32 %v393, %v1250
  %v1735 = vmul.f32 %v396, %v1265
  %v1736 = vmul.f32 %v399, %v1280
  %v1737 = vmul.f32 %v402, %v1295
  %v1738 = vmul.f32 %v405, %v1310
  %v1739 = vmul.f32 %v408, %v1325
  %v1740 = vmul.f32 %v411, %v1340
  %v1741 = vmul.f32 %v414, %v1355
  %v1742 = vmul.f32 %v417, %v1370
  %v1743 = vmul.f32 %v420, %v1385
  %v1744 = vmul.f32 %v423, %v1400
  %v1745 = vmul.f32 %v426, %v1415
  %v1746 = vmul.f32 %v429, %v1430
  %v1747 = vmul.f32 %v432, %v1445
  %v1748 = vmul.f32 %v435, %v1460
  %v1749 = vmul.f32 %v438, %v1475
  %v1750 = vmul.f32 %v441, %v1490
  %v1751 = vmul.f32 %v444, %v1505
  %v1752 = vmul.f32 %v447, %v1520
  %v1753 = vmul.f32 %v450, %v1535
  %v1754 = vmul.f32 %v453, %v1550
  %v1755 = vmul.f32 %v456, %v1565
  %v1756 = vmul.f32 %v459, %v1580
  %v1757 = vmul.f32 %v462, %v1595
  %v1758 = vmul.f32 %v465, %v1610
  %v1759 = vmul.f32 %v468, %v1625
  %v1760 = vmul.f32 %v471, %v1640
  %v1761 = vmul.f32 %v474, %v1655
  %v1762 = vmul.f32 %v477, %v1670
  %v1763 = vmul.f32 %v480, %v1685
  %v1764 = vmul.f32 %v483, %v1700
  %vm1765 = vcmask 31744
  %1766 = vst.msk [vmem:[%s3] sm:$0xff] %vm1765, %v1701
  %1767 = vst.msk [vmem:[%s3 + $0x8] sm:$0xff] %vm1765, %v1702
  %1768 = vst.msk [vmem:[%s3 + $0x10] sm:$0xff] %vm1765, %v1703
  %1769 = vst.msk [vmem:[%s3 + $0x18] sm:$0xff] %vm1765, %v1704
  %1770 = vst.msk [vmem:[%s3 + $0x20] sm:$0xff] %vm1765, %v1705
  %1771 = vst.msk [vmem:[%s3 + $0x28] sm:$0xff] %vm1765, %v1706
  %1772 = vst.msk [vmem:[%s3 + $0x30] sm:$0xff] %vm1765, %v1707
  %1773 = vst.msk [vmem:[%s3 + $0x38] sm:$0xff] %vm1765, %v1708
  %1774 = vst.msk [vmem:[%s3 + $0x40] sm:$0xff] %vm1765, %v1709
  %1775 = vst.msk [vmem:[%s3 + $0x48] sm:$0xff] %vm1765, %v1710
  %1776 = vst.msk [vmem:[%s3 + $0x50] sm:$0xff] %vm1765, %v1711
  %1777 = vst.msk [vmem:[%s3 + $0x58] sm:$0xff] %vm1765, %v1712
  %1778 = vst.msk [vmem:[%s3 + $0x60] sm:$0xff] %vm1765, %v1713
  %1779 = vst.msk [vmem:[%s3 + $0x68] sm:$0xff] %vm1765, %v1714
  %1780 = vst.msk [vmem:[%s3 + $0x70] sm:$0xff] %vm1765, %v1715
  %1781 = vst.msk [vmem:[%s3 + $0x78] sm:$0xff] %vm1765, %v1716
  %1782 = vst.msk [vmem:[%s3 + $0x80] sm:$0xff] %vm1765, %v1717
  %1783 = vst.msk [vmem:[%s3 + $0x88] sm:$0xff] %vm1765, %v1718
  %1784 = vst.msk [vmem:[%s3 + $0x90] sm:$0xff] %vm1765, %v1719
  %1785 = vst.msk [vmem:[%s3 + $0x98] sm:$0xff] %vm1765, %v1720
  %1786 = vst.msk [vmem:[%s3 + $0xa0] sm:$0xff] %vm1765, %v1721
  %1787 = vst.msk [vmem:[%s3 + $0xa8] sm:$0xff] %vm1765, %v1722
  %1788 = vst.msk [vmem:[%s3 + $0xb0] sm:$0xff] %vm1765, %v1723
  %1789 = vst.msk [vmem:[%s3 + $0xb8] sm:$0xff] %vm1765, %v1724
  %1790 = vst.msk [vmem:[%s3 + $0xc0] sm:$0xff] %vm1765, %v1725
  %1791 = vst.msk [vmem:[%s3 + $0xc8] sm:$0xff] %vm1765, %v1726
  %1792 = vst.msk [vmem:[%s3 + $0xd0] sm:$0xff] %vm1765, %v1727
  %1793 = vst.msk [vmem:[%s3 + $0xd8] sm:$0xff] %vm1765, %v1728
  %1794 = vst.msk [vmem:[%s3 + $0xe0] sm:$0xff] %vm1765, %v1729
  %1795 = vst.msk [vmem:[%s3 + $0xe8] sm:$0xff] %vm1765, %v1730
  %1796 = vst.msk [vmem:[%s3 + $0xf0] sm:$0xff] %vm1765, %v1731
  %1797 = vst.msk [vmem:[%s3 + $0xf8] sm:$0xff] %vm1765, %v1732
  %1798 = vst.msk [vmem:[%s3 + $0x100] sm:$0xff] %vm1765, %v1733
  %1799 = vst.msk [vmem:[%s3 + $0x108] sm:$0xff] %vm1765, %v1734
  %1800 = vst.msk [vmem:[%s3 + $0x110] sm:$0xff] %vm1765, %v1735
  %1801 = vst.msk [vmem:[%s3 + $0x118] sm:$0xff] %vm1765, %v1736
  %1802 = vst.msk [vmem:[%s3 + $0x120] sm:$0xff] %vm1765, %v1737
  %1803 = vst.msk [vmem:[%s3 + $0x128] sm:$0xff] %vm1765, %v1738
  %1804 = vst.msk [vmem:[%s3 + $0x130] sm:$0xff] %vm1765, %v1739
  %1805 = vst.msk [vmem:[%s3 + $0x138] sm:$0xff] %vm1765, %v1740
  %1806 = vst.msk [vmem:[%s3 + $0x140] sm:$0xff] %vm1765, %v1741
  %1807 = vst.msk [vmem:[%s3 + $0x148] sm:$0xff] %vm1765, %v1742
  %1808 = vst.msk [vmem:[%s3 + $0x150] sm:$0xff] %vm1765, %v1743
  %1809 = vst.msk [vmem:[%s3 + $0x158] sm:$0xff] %vm1765, %v1744
  %1810 = vst.msk [vmem:[%s3 + $0x160] sm:$0xff] %vm1765, %v1745
  %1811 = vst.msk [vmem:[%s3 + $0x168] sm:$0xff] %vm1765, %v1746
  %1812 = vst.msk [vmem:[%s3 + $0x170] sm:$0xff] %vm1765, %v1747
  %1813 = vst.msk [vmem:[%s3 + $0x178] sm:$0xff] %vm1765, %v1748
  %1814 = vst.msk [vmem:[%s3 + $0x180] sm:$0xff] %vm1765, %v1749
  %1815 = vst.msk [vmem:[%s3 + $0x188] sm:$0xff] %vm1765, %v1750
  %1816 = vst.msk [vmem:[%s3 + $0x190] sm:$0xff] %vm1765, %v1751
  %1817 = vst.msk [vmem:[%s3 + $0x198] sm:$0xff] %vm1765, %v1752
  %1818 = vst.msk [vmem:[%s3 + $0x1a0] sm:$0xff] %vm1765, %v1753
  %1819 = vst.msk [vmem:[%s3 + $0x1a8] sm:$0xff] %vm1765, %v1754
  %1820 = vst.msk [vmem:[%s3 + $0x1b0] sm:$0xff] %vm1765, %v1755
  %1821 = vst.msk [vmem:[%s3 + $0x1b8] sm:$0xff] %vm1765, %v1756
  %1822 = vst.msk [vmem:[%s3 + $0x1c0] sm:$0xff] %vm1765, %v1757
  %1823 = vst.msk [vmem:[%s3 + $0x1c8] sm:$0xff] %vm1765, %v1758
  %1824 = vst.msk [vmem:[%s3 + $0x1d0] sm:$0xff] %vm1765, %v1759
  %1825 = vst.msk [vmem:[%s3 + $0x1d8] sm:$0xff] %vm1765, %v1760
  %1826 = vst.msk [vmem:[%s3 + $0x1e0] sm:$0xff] %vm1765, %v1761
  %1827 = vst.msk [vmem:[%s3 + $0x1e8] sm:$0xff] %vm1765, %v1762
  %1828 = vst.msk [vmem:[%s3 + $0x1f0] sm:$0xff] %vm1765, %v1763
  %1829 = vst.msk [vmem:[%s3 + $0x1f8] sm:$0xff] %vm1765, %v1764
  // Predicated region
  $region14: #{tpu_custom_call.1} parent=0 // pred_check
    _
  $region15: #{tpu_custom_call.1} parent=0 // pred_check_branch
    %1831 = sbr.rel (0) target = $region17
  $region16: #{tpu_custom_call.1} parent=0 // pred_region
    _
  $region17: #{tpu_custom_call.1} parent=0 // pred_fallthru
    _
  // Predicated region
  $region18: #{tpu_custom_call.1} parent=0 // pred_check
    _
  $region19: #{tpu_custom_call.1} parent=0 // pred_check_branch
    %1833 = sbr.rel (0) target = $region21
  $region20: #{tpu_custom_call.1} parent=0 // pred_region
    _
  $region21: #{tpu_custom_call.1} parent=0 // pred_fallthru
    _

</llo_original>
